<compile_context>
chip_gen: v5e
topology: v5e:2x2
jax: 0.10.0
libtpu: 0.0.40
codegen_flags: <defaults>
</compile_context>

<pallas_src>
import functools
import math

import jax
import jax.numpy as jnp
from jax.experimental import pallas as pl
from jax.experimental.pallas import tpu as pltpu


def _layer_norm(x, alpha, bias, eps=1e-6):
    # Matches the classic tutorial LayerNorm: torch .std() is unbiased (N-1).
    d = x.shape[-1]
    mean = jnp.mean(x, axis=-1, keepdims=True)
    var_unbiased = jnp.sum((x - mean) ** 2, axis=-1, keepdims=True) * (1.0 / (d - 1))
    std = jnp.sqrt(var_unbiased)
    inv = pl.reciprocal(std + eps, approx=True)     # EUP, not a VPU divide
    return alpha * (x - mean) * inv + bias


def encoder_layer_kernel(
    xq_ref, xkv_ref, mask_ref,
    wq_ref, bq_ref, wk_ref, bk_ref, wv_ref, bv_ref,
    woh_ref, bo_ref,
    ln1a_ref, ln1b_ref,
    w1_ref, b1_ref, w2_ref, b2_ref,
    ln2a_ref, ln2b_ref,
    out_ref,
    *, n_heads,
):
    x_q = xq_ref[...]                 # [tq, D]  f32 (query rows of this program)
    x_kv = xkv_ref[...]               # [S,  D]  f32 (full sequence, K/V source)
    tq, d_model = x_q.shape
    d_k = d_model // n_heads
    scale = 1.0 / math.sqrt(d_k)

    xq_b = x_q.astype(jnp.bfloat16)
    xkv_b = x_kv.astype(jnp.bfloat16)

    # ---- projections: full-width, MXU-shaped (K = D), f32 accumulation -----
    q = jnp.dot(xq_b, wq_ref[...], preferred_element_type=jnp.float32) + bq_ref[...]
    k = jnp.dot(xkv_b, wk_ref[...], preferred_element_type=jnp.float32) + bk_ref[...]
    v = jnp.dot(xkv_b, wv_ref[...], preferred_element_type=jnp.float32) + bv_ref[...]

    # Additive mask, computed once (hoisted out of the per-head work).
    neg = jnp.where(mask_ref[...] == 0, jnp.float32(-1e9), jnp.float32(0.0))  # [tq, S]

    # ---- multi-head attention: per-head accumulation, no concat / no .T ----
    attn_acc = jnp.zeros((tq, d_model), jnp.float32)
    for h in range(n_heads):                       # unrolled at trace time
        lo = h * d_k
        qh = q[:, lo:lo + d_k].astype(jnp.bfloat16)     # [tq, d_k]
        kh = k[:, lo:lo + d_k].astype(jnp.bfloat16)     # [S,  d_k]
        vh = v[:, lo:lo + d_k].astype(jnp.bfloat16)     # [S,  d_k]

        # q @ k^T with the transpose absorbed into the contraction.
        s = jax.lax.dot_general(
            qh, kh,
            dimension_numbers=(((1,), (1,)), ((), ())),
            preferred_element_type=jnp.float32) * scale            # [tq, S]
        s = s + neg
        s = s - jnp.max(s, axis=-1, keepdims=True)
        p = jnp.exp(s)
        p = p * pl.reciprocal(jnp.sum(p, axis=-1, keepdims=True), approx=True)

        ctx = jnp.dot(p.astype(jnp.bfloat16), vh,
                      preferred_element_type=jnp.float32)           # [tq, d_k]
        # Accumulate this head's contribution to the output projection directly.
        attn_acc = attn_acc + jnp.dot(ctx.astype(jnp.bfloat16), woh_ref[h],
                                      preferred_element_type=jnp.float32)

    attn = attn_acc + bo_ref[...]

    # dropout_1 is identity at inference
    y = x_q + attn
    y = _layer_norm(y, ln1a_ref[...], ln1b_ref[...])

    # ---- feed forward (Linear -> ReLU -> Linear), bf16 dot inputs -----------
    h1 = jnp.dot(y.astype(jnp.bfloat16), w1_ref[...],
                 preferred_element_type=jnp.float32) + b1_ref[...]
    h1 = jnp.maximum(h1, 0.0)
    ff = jnp.dot(h1.astype(jnp.bfloat16), w2_ref[...],
                 preferred_element_type=jnp.float32) + b2_ref[...]

    # dropout_2 is identity at inference
    y = y + ff
    y = _layer_norm(y, ln2a_ref[...], ln2b_ref[...])

    out_ref[...] = y.astype(out_ref.dtype)


def encoder_layer(x, mask, params, *, n_heads, block_q=128):
    B, S, D = x.shape
    F = params["w1"].shape[1]
    assert D % n_heads == 0
    d_k = D // n_heads
    tq = min(block_q, S)
    assert S % tq == 0, "sequence length must be a multiple of the query tile"
    n_qb = S // tq

    bf16 = jnp.bfloat16
    wq = params["wq"].astype(bf16)
    wk = params["wk"].astype(bf16)
    wv = params["wv"].astype(bf16)
    # Output projection reorganised head-major ([D, D] -> [H, d_k, D]) so the kernel
    # can accumulate head outputs without a concatenate.
    wo_h = params["wo"].reshape(n_heads, d_k, D).astype(bf16)
    w1 = params["w1"].astype(bf16)
    w2 = params["w2"].astype(bf16)

    def _rep(shape):
        zeros = (0,) * len(shape)
        return pl.BlockSpec(shape, lambda b, qi: zeros)

    in_specs = [
        pl.BlockSpec((None, tq, D), lambda b, qi: (b, qi, 0)),   # x: query rows
        pl.BlockSpec((None, S, D), lambda b, qi: (b, 0, 0)),     # x: full sequence (K/V)
        pl.BlockSpec((None, tq, S), lambda b, qi: (b, qi, 0)),   # mask rows
        _rep((D, D)), _rep((1, D)),                  # wq, bq
        _rep((D, D)), _rep((1, D)),                  # wk, bk
        _rep((D, D)), _rep((1, D)),                  # wv, bv
        _rep((n_heads, d_k, D)), _rep((1, D)),       # wo (per-head), bo
        _rep((1, D)), _rep((1, D)),                  # ln1 alpha, bias
        _rep((D, F)), _rep((1, F)),                  # w1, b1
        _rep((F, D)), _rep((1, D)),                  # w2, b2
        _rep((1, D)), _rep((1, D)),                  # ln2 alpha, bias
    ]

    kernel = functools.partial(encoder_layer_kernel, n_heads=n_heads)
    return pl.pallas_call(
        kernel,
        out_shape=jax.ShapeDtypeStruct((B, S, D), x.dtype),
        grid=(B, n_qb),
        in_specs=in_specs,
        out_specs=pl.BlockSpec((None, tq, D), lambda b, qi: (b, qi, 0)),
        compiler_params=pltpu.CompilerParams(
            dimension_semantics=("parallel", "parallel"),
            vmem_limit_bytes=56 * 1024 * 1024,      # <= 56 MiB: fits v7x's 64 MiB VMEM
        ),
    )(
        x, x, mask,
        wq, params["bq"], wk, params["bk"], wv, params["bv"],
        wo_h, params["bo"],
        params["ln1_a"], params["ln1_b"],
        w1, params["b1"], w2, params["b2"],
        params["ln2_a"], params["ln2_b"],
    )


def reference_encoder_layer(x, mask, params, *, n_heads):
    """Plain-JAX f32 reference (same math) for a correctness check."""
    B, S, D = x.shape
    d_k = D // n_heads

    def ln(x, a, b, eps=1e-6):
        mean = jnp.mean(x, axis=-1, keepdims=True)
        std = jnp.sqrt(jnp.sum((x - mean) ** 2, axis=-1, keepdims=True) / (D - 1))
        return a * (x - mean) / (std + eps) + b

    q = x @ params["wq"] + params["bq"]
    k = x @ params["wk"] + params["bk"]
    v = x @ params["wv"] + params["bv"]
    q = q.reshape(B, S, n_heads, d_k).transpose(0, 2, 1, 3)
    k = k.reshape(B, S, n_heads, d_k).transpose(0, 2, 1, 3)
    v = v.reshape(B, S, n_heads, d_k).transpose(0, 2, 1, 3)
    scores = jnp.einsum("bhqd,bhkd->bhqk", q, k) / math.sqrt(d_k)
    scores = jnp.where(mask[:, None, :, :] == 0, -1e9, scores)
    p = jax.nn.softmax(scores, axis=-1)
    attn = jnp.einsum("bhqk,bhkd->bhqd", p, v).transpose(0, 2, 1, 3).reshape(B, S, D)
    attn = attn @ params["wo"] + params["bo"]
    x = ln(x + attn, params["ln1_a"], params["ln1_b"])
    ff = jnp.maximum(x @ params["w1"] + params["b1"], 0.0) @ params["w2"] + params["b2"]
    return ln(x + ff, params["ln2_a"], params["ln2_b"])


def init_params(key, d_model, d_ff):
    ks = jax.random.split(key, 6)
    s = 0.05
    return {
        "wq": s * jax.random.normal(ks[0], (d_model, d_model), jnp.float32),
        "bq": jnp.zeros((1, d_model), jnp.float32),
        "wk": s * jax.random.normal(ks[1], (d_model, d_model), jnp.float32),
        "bk": jnp.zeros((1, d_model), jnp.float32),
        "wv": s * jax.random.normal(ks[2], (d_model, d_model), jnp.float32),
        "bv": jnp.zeros((1, d_model), jnp.float32),
        "wo": s * jax.random.normal(ks[3], (d_model, d_model), jnp.float32),
        "bo": jnp.zeros((1, d_model), jnp.float32),
        "ln1_a": jnp.ones((1, d_model), jnp.float32),
        "ln1_b": jnp.zeros((1, d_model), jnp.float32),
        "w1": s * jax.random.normal(ks[4], (d_model, d_ff), jnp.float32),
        "b1": jnp.zeros((1, d_ff), jnp.float32),
        "w2": s * jax.random.normal(ks[5], (d_ff, d_model), jnp.float32),
        "b2": jnp.zeros((1, d_model), jnp.float32),
        "ln2_a": jnp.ones((1, d_model), jnp.float32),
        "ln2_b": jnp.zeros((1, d_model), jnp.float32),
    }


if __name__ == "__main__":
    # TODO(synk): tutorial FeedForward default is d_ff=2048; using 4*d_model for a small synthetic run.
    B, S, d_model, n_heads = 2, 8, 32, 4
    d_ff = 4 * d_model

    key = jax.random.PRNGKey(0)
    kx, kp = jax.random.split(key)
    x = jax.random.normal(kx, (B, S, d_model), jnp.float32)
    # full attention for batch 0, lower-triangular (causal) for batch 1
    mask0 = jnp.ones((S, S), jnp.float32)
    mask1 = jnp.tril(jnp.ones((S, S), jnp.float32))
    mask = jnp.stack([mask0, mask1], axis=0)            # [B, S, S]

    params = init_params(kp, d_model, d_ff)

    out = encoder_layer(x, mask, params, n_heads=n_heads)
    out = jax.block_until_ready(out)

    ref = reference_encoder_layer(x, mask, params, n_heads=n_heads)
    assert out.shape == (B, S, d_model)
    # bf16 MXU inputs + approx reciprocals -> slightly looser tolerance than pure f32.
    err = float(jnp.max(jnp.abs(out - ref)))
    assert jnp.allclose(out, ref, atol=3e-2, rtol=3e-2), err

    print("KERNEL_OK")
</pallas_src>

<mosaic_0001>
module attributes {stable_mosaic.version = 11 : i64} {
  func.func @encoder_layer_kernel(%arg0: i32, %arg1: i32, %arg2: memref<1x8x32xf32, #tpu.memory_space<vmem>>, %arg3: memref<1x8x32xf32, #tpu.memory_space<vmem>>, %arg4: memref<1x8x8xf32, #tpu.memory_space<vmem>>, %arg5: memref<32x32xbf16, #tpu.memory_space<vmem>>, %arg6: memref<1x32xf32, #tpu.memory_space<vmem>>, %arg7: memref<32x32xbf16, #tpu.memory_space<vmem>>, %arg8: memref<1x32xf32, #tpu.memory_space<vmem>>, %arg9: memref<32x32xbf16, #tpu.memory_space<vmem>>, %arg10: memref<1x32xf32, #tpu.memory_space<vmem>>, %arg11: memref<4x8x32xbf16, #tpu.memory_space<vmem>>, %arg12: memref<1x32xf32, #tpu.memory_space<vmem>>, %arg13: memref<1x32xf32, #tpu.memory_space<vmem>>, %arg14: memref<1x32xf32, #tpu.memory_space<vmem>>, %arg15: memref<32x128xbf16, #tpu.memory_space<vmem>>, %arg16: memref<1x128xf32, #tpu.memory_space<vmem>>, %arg17: memref<128x32xbf16, #tpu.memory_space<vmem>>, %arg18: memref<1x32xf32, #tpu.memory_space<vmem>>, %arg19: memref<1x32xf32, #tpu.memory_space<vmem>>, %arg20: memref<1x32xf32, #tpu.memory_space<vmem>>, %arg21: memref<1x8x32xf32, #tpu.memory_space<vmem>>) attributes {dimension_semantics = [#tpu.dimension_semantics<parallel>, #tpu.dimension_semantics<parallel>], iteration_bounds = array<i64: 2, 1>, scalar_prefetch = 0 : i64, scratch_operands = 0 : i64, tpu.core_type = #tpu.core_type<tc>, window_params = [{transform_indices = @transform_0, window_bounds = array<i64: 1, 8, 32>}, {transform_indices = @transform_1, window_bounds = array<i64: 1, 8, 32>}, {transform_indices = @transform_2, window_bounds = array<i64: 1, 8, 8>}, {pipeline_mode = #tpu.pipeline_mode<synchronous>, transform_indices = @transform_3, window_bounds = array<i64: 32, 32>}, {pipeline_mode = #tpu.pipeline_mode<synchronous>, transform_indices = @transform_4, window_bounds = array<i64: 1, 32>}, {pipeline_mode = #tpu.pipeline_mode<synchronous>, transform_indices = @transform_5, window_bounds = array<i64: 32, 32>}, {pipeline_mode = #tpu.pipeline_mode<synchronous>, transform_indices = @transform_6, window_bounds = array<i64: 1, 32>}, {pipeline_mode = #tpu.pipeline_mode<synchronous>, transform_indices = @transform_7, window_bounds = array<i64: 32, 32>}, {pipeline_mode = #tpu.pipeline_mode<synchronous>, transform_indices = @transform_8, window_bounds = array<i64: 1, 32>}, {pipeline_mode = #tpu.pipeline_mode<synchronous>, transform_indices = @transform_9, window_bounds = array<i64: 4, 8, 32>}, {pipeline_mode = #tpu.pipeline_mode<synchronous>, transform_indices = @transform_10, window_bounds = array<i64: 1, 32>}, {pipeline_mode = #tpu.pipeline_mode<synchronous>, transform_indices = @transform_11, window_bounds = array<i64: 1, 32>}, {pipeline_mode = #tpu.pipeline_mode<synchronous>, transform_indices = @transform_12, window_bounds = array<i64: 1, 32>}, {pipeline_mode = #tpu.pipeline_mode<synchronous>, transform_indices = @transform_13, window_bounds = array<i64: 32, 128>}, {pipeline_mode = #tpu.pipeline_mode<synchronous>, transform_indices = @transform_14, window_bounds = array<i64: 1, 128>}, {pipeline_mode = #tpu.pipeline_mode<synchronous>, transform_indices = @transform_15, window_bounds = array<i64: 128, 32>}, {pipeline_mode = #tpu.pipeline_mode<synchronous>, transform_indices = @transform_16, window_bounds = array<i64: 1, 32>}, {pipeline_mode = #tpu.pipeline_mode<synchronous>, transform_indices = @transform_17, window_bounds = array<i64: 1, 32>}, {pipeline_mode = #tpu.pipeline_mode<synchronous>, transform_indices = @transform_18, window_bounds = array<i64: 1, 32>}, {transform_indices = @transform_19, window_bounds = array<i64: 1, 8, 32>}]} {
    %c0 = arith.constant 0 : index
    %c0_0 = arith.constant 0 : index
    %c0_1 = arith.constant 0 : index
    %0 = vector.load %arg2[%c0, %c0_0, %c0_1] : memref<1x8x32xf32, #tpu.memory_space<vmem>>, vector<1x8x32xf32>
    %1 = vector.shape_cast %0 : vector<1x8x32xf32> to vector<8x32xf32>
    %c0_2 = arith.constant 0 : index
    %c0_3 = arith.constant 0 : index
    %c0_4 = arith.constant 0 : index
    %2 = vector.load %arg3[%c0_2, %c0_3, %c0_4] : memref<1x8x32xf32, #tpu.memory_space<vmem>>, vector<1x8x32xf32>
    %3 = vector.shape_cast %2 : vector<1x8x32xf32> to vector<8x32xf32>
    %4 = arith.truncf %1 : vector<8x32xf32> to vector<8x32xbf16>
    %5 = arith.truncf %3 : vector<8x32xf32> to vector<8x32xbf16>
    %c0_5 = arith.constant 0 : index
    %c0_6 = arith.constant 0 : index
    %6 = vector.load %arg5[%c0_5, %c0_6] : memref<32x32xbf16, #tpu.memory_space<vmem>>, vector<32x32xbf16>
    %cst = arith.constant dense<0.000000e+00> : vector<8x32xf32>
    %7 = tpu.matmul %4, %6, %cst {dimension_numbers = #tpu.dot_dimension_numbers<[1], [0], [0], [1], [0, 0, 1, 1], [], []>} : vector<8x32xbf16>, vector<32x32xbf16>, vector<8x32xf32> -> vector<8x32xf32>
    %c0_7 = arith.constant 0 : index
    %c0_8 = arith.constant 0 : index
    %8 = vector.load %arg6[%c0_7, %c0_8] : memref<1x32xf32, #tpu.memory_space<vmem>>, vector<1x32xf32>
    %9 = vector.broadcast %8 : vector<1x32xf32> to vector<8x32xf32>
    %10 = arith.addf %7, %9 : vector<8x32xf32>
    %c0_9 = arith.constant 0 : index
    %c0_10 = arith.constant 0 : index
    %11 = vector.load %arg7[%c0_9, %c0_10] : memref<32x32xbf16, #tpu.memory_space<vmem>>, vector<32x32xbf16>
    %cst_11 = arith.constant dense<0.000000e+00> : vector<8x32xf32>
    %12 = tpu.matmul %5, %11, %cst_11 {dimension_numbers = #tpu.dot_dimension_numbers<[1], [0], [0], [1], [0, 0, 1, 1], [], []>} : vector<8x32xbf16>, vector<32x32xbf16>, vector<8x32xf32> -> vector<8x32xf32>
    %c0_12 = arith.constant 0 : index
    %c0_13 = arith.constant 0 : index
    %13 = vector.load %arg8[%c0_12, %c0_13] : memref<1x32xf32, #tpu.memory_space<vmem>>, vector<1x32xf32>
    %14 = vector.broadcast %13 : vector<1x32xf32> to vector<8x32xf32>
    %15 = arith.addf %12, %14 : vector<8x32xf32>
    %c0_14 = arith.constant 0 : index
    %c0_15 = arith.constant 0 : index
    %16 = vector.load %arg9[%c0_14, %c0_15] : memref<32x32xbf16, #tpu.memory_space<vmem>>, vector<32x32xbf16>
    %cst_16 = arith.constant dense<0.000000e+00> : vector<8x32xf32>
    %17 = tpu.matmul %5, %16, %cst_16 {dimension_numbers = #tpu.dot_dimension_numbers<[1], [0], [0], [1], [0, 0, 1, 1], [], []>} : vector<8x32xbf16>, vector<32x32xbf16>, vector<8x32xf32> -> vector<8x32xf32>
    %c0_17 = arith.constant 0 : index
    %c0_18 = arith.constant 0 : index
    %18 = vector.load %arg10[%c0_17, %c0_18] : memref<1x32xf32, #tpu.memory_space<vmem>>, vector<1x32xf32>
    %19 = vector.broadcast %18 : vector<1x32xf32> to vector<8x32xf32>
    %20 = arith.addf %17, %19 : vector<8x32xf32>
    %c0_19 = arith.constant 0 : index
    %c0_20 = arith.constant 0 : index
    %c0_21 = arith.constant 0 : index
    %21 = vector.load %arg4[%c0_19, %c0_20, %c0_21] : memref<1x8x8xf32, #tpu.memory_space<vmem>>, vector<1x8x8xf32>
    %22 = vector.shape_cast %21 : vector<1x8x8xf32> to vector<8x8xf32>
    %cst_22 = arith.constant 0.000000e+00 : f32
    %23 = vector.broadcast %cst_22 : f32 to vector<8x8xf32>
    %24 = arith.cmpf oeq, %22, %23 : vector<8x8xf32>
    %cst_23 = arith.constant -1.000000e+09 : f32
    %cst_24 = arith.constant 0.000000e+00 : f32
    %25 = vector.broadcast %cst_23 : f32 to vector<8x8xf32>
    %26 = vector.broadcast %cst_24 : f32 to vector<8x8xf32>
    %27 = arith.select %24, %25, %26 : vector<8x8xi1>, vector<8x8xf32>
    %cst_25 = arith.constant 0.000000e+00 : f32
    %28 = vector.broadcast %cst_25 : f32 to vector<8x32xf32>
    %29 = vector.extract_strided_slice %10 {offsets = [0, 0], sizes = [8, 8], strides = [1, 1]} : vector<8x32xf32> to vector<8x8xf32>
    %30 = arith.truncf %29 : vector<8x8xf32> to vector<8x8xbf16>
    %31 = vector.extract_strided_slice %15 {offsets = [0, 0], sizes = [8, 8], strides = [1, 1]} : vector<8x32xf32> to vector<8x8xf32>
    %32 = arith.truncf %31 : vector<8x8xf32> to vector<8x8xbf16>
    %33 = vector.extract_strided_slice %20 {offsets = [0, 0], sizes = [8, 8], strides = [1, 1]} : vector<8x32xf32> to vector<8x8xf32>
    %34 = arith.truncf %33 : vector<8x8xf32> to vector<8x8xbf16>
    %cst_26 = arith.constant dense<0.000000e+00> : vector<8x8xf32>
    %35 = tpu.matmul %30, %32, %cst_26 {dimension_numbers = #tpu.dot_dimension_numbers<[1], [1], [0], [0], [0, 0, 1, 0], [], []>} : vector<8x8xbf16>, vector<8x8xbf16>, vector<8x8xf32> -> vector<8x8xf32>
    %cst_27 = arith.constant 0.353553385 : f32
    %36 = vector.broadcast %cst_27 : f32 to vector<8x8xf32>
    %37 = arith.mulf %35, %36 : vector<8x8xf32>
    %38 = arith.addf %37, %27 : vector<8x8xf32>
    %cst_28 = arith.constant dense<0xFF800000> : vector<8xf32>
    %39 = vector.multi_reduction <maximumf>, %38, %cst_28 [1] : vector<8x8xf32> to vector<8xf32>
    %40 = vector.shape_cast %39 : vector<8xf32> to vector<8x1xf32>
    %41 = vector.broadcast %40 : vector<8x1xf32> to vector<8x8xf32>
    %42 = arith.subf %38, %41 : vector<8x8xf32>
    %43 = math.exp %42 : vector<8x8xf32>
    %cst_29 = arith.constant dense<0.000000e+00> : vector<8xf32>
    %44 = vector.multi_reduction <add>, %43, %cst_29 [1] : vector<8x8xf32> to vector<8xf32>
    %45 = vector.shape_cast %44 : vector<8xf32> to vector<8x1xf32>
    %46 = tpu.reciprocal %45 {approx = true} : vector<8x1xf32> -> vector<8x1xf32>
    %47 = vector.broadcast %46 : vector<8x1xf32> to vector<8x8xf32>
    %48 = arith.mulf %43, %47 : vector<8x8xf32>
    %49 = arith.truncf %48 : vector<8x8xf32> to vector<8x8xbf16>
    %cst_30 = arith.constant dense<0.000000e+00> : vector<8x8xf32>
    %50 = tpu.matmul %49, %34, %cst_30 {dimension_numbers = #tpu.dot_dimension_numbers<[1], [0], [0], [1], [0, 0, 1, 1], [], []>} : vector<8x8xbf16>, vector<8x8xbf16>, vector<8x8xf32> -> vector<8x8xf32>
    %51 = arith.truncf %50 : vector<8x8xf32> to vector<8x8xbf16>
    %c0_31 = arith.constant 0 : index
    %c0_32 = arith.constant 0 : index
    %c0_33 = arith.constant 0 : index
    %52 = vector.load %arg11[%c0_31, %c0_32, %c0_33] : memref<4x8x32xbf16, #tpu.memory_space<vmem>>, vector<1x8x32xbf16>
    %53 = vector.shape_cast %52 : vector<1x8x32xbf16> to vector<8x32xbf16>
    %cst_34 = arith.constant dense<0.000000e+00> : vector<8x32xf32>
    %54 = tpu.matmul %51, %53, %cst_34 {dimension_numbers = #tpu.dot_dimension_numbers<[1], [0], [0], [1], [0, 0, 1, 1], [], []>} : vector<8x8xbf16>, vector<8x32xbf16>, vector<8x32xf32> -> vector<8x32xf32>
    %55 = arith.addf %28, %54 : vector<8x32xf32>
    %56 = vector.extract_strided_slice %10 {offsets = [0, 8], sizes = [8, 8], strides = [1, 1]} : vector<8x32xf32> to vector<8x8xf32>
    %57 = arith.truncf %56 : vector<8x8xf32> to vector<8x8xbf16>
    %58 = vector.extract_strided_slice %15 {offsets = [0, 8], sizes = [8, 8], strides = [1, 1]} : vector<8x32xf32> to vector<8x8xf32>
    %59 = arith.truncf %58 : vector<8x8xf32> to vector<8x8xbf16>
    %60 = vector.extract_strided_slice %20 {offsets = [0, 8], sizes = [8, 8], strides = [1, 1]} : vector<8x32xf32> to vector<8x8xf32>
    %61 = arith.truncf %60 : vector<8x8xf32> to vector<8x8xbf16>
    %cst_35 = arith.constant dense<0.000000e+00> : vector<8x8xf32>
    %62 = tpu.matmul %57, %59, %cst_35 {dimension_numbers = #tpu.dot_dimension_numbers<[1], [1], [0], [0], [0, 0, 1, 0], [], []>} : vector<8x8xbf16>, vector<8x8xbf16>, vector<8x8xf32> -> vector<8x8xf32>
    %cst_36 = arith.constant 0.353553385 : f32
    %63 = vector.broadcast %cst_36 : f32 to vector<8x8xf32>
    %64 = arith.mulf %62, %63 : vector<8x8xf32>
    %65 = arith.addf %64, %27 : vector<8x8xf32>
    %cst_37 = arith.constant dense<0xFF800000> : vector<8xf32>
    %66 = vector.multi_reduction <maximumf>, %65, %cst_37 [1] : vector<8x8xf32> to vector<8xf32>
    %67 = vector.shape_cast %66 : vector<8xf32> to vector<8x1xf32>
    %68 = vector.broadcast %67 : vector<8x1xf32> to vector<8x8xf32>
    %69 = arith.subf %65, %68 : vector<8x8xf32>
    %70 = math.exp %69 : vector<8x8xf32>
    %cst_38 = arith.constant dense<0.000000e+00> : vector<8xf32>
    %71 = vector.multi_reduction <add>, %70, %cst_38 [1] : vector<8x8xf32> to vector<8xf32>
    %72 = vector.shape_cast %71 : vector<8xf32> to vector<8x1xf32>
    %73 = tpu.reciprocal %72 {approx = true} : vector<8x1xf32> -> vector<8x1xf32>
    %74 = vector.broadcast %73 : vector<8x1xf32> to vector<8x8xf32>
    %75 = arith.mulf %70, %74 : vector<8x8xf32>
    %76 = arith.truncf %75 : vector<8x8xf32> to vector<8x8xbf16>
    %cst_39 = arith.constant dense<0.000000e+00> : vector<8x8xf32>
    %77 = tpu.matmul %76, %61, %cst_39 {dimension_numbers = #tpu.dot_dimension_numbers<[1], [0], [0], [1], [0, 0, 1, 1], [], []>} : vector<8x8xbf16>, vector<8x8xbf16>, vector<8x8xf32> -> vector<8x8xf32>
    %78 = arith.truncf %77 : vector<8x8xf32> to vector<8x8xbf16>
    %c1 = arith.constant 1 : index
    %c0_40 = arith.constant 0 : index
    %c0_41 = arith.constant 0 : index
    %79 = vector.load %arg11[%c1, %c0_40, %c0_41] : memref<4x8x32xbf16, #tpu.memory_space<vmem>>, vector<1x8x32xbf16>
    %80 = vector.shape_cast %79 : vector<1x8x32xbf16> to vector<8x32xbf16>
    %cst_42 = arith.constant dense<0.000000e+00> : vector<8x32xf32>
    %81 = tpu.matmul %78, %80, %cst_42 {dimension_numbers = #tpu.dot_dimension_numbers<[1], [0], [0], [1], [0, 0, 1, 1], [], []>} : vector<8x8xbf16>, vector<8x32xbf16>, vector<8x32xf32> -> vector<8x32xf32>
    %82 = arith.addf %55, %81 : vector<8x32xf32>
    %83 = vector.extract_strided_slice %10 {offsets = [0, 16], sizes = [8, 8], strides = [1, 1]} : vector<8x32xf32> to vector<8x8xf32>
    %84 = arith.truncf %83 : vector<8x8xf32> to vector<8x8xbf16>
    %85 = vector.extract_strided_slice %15 {offsets = [0, 16], sizes = [8, 8], strides = [1, 1]} : vector<8x32xf32> to vector<8x8xf32>
    %86 = arith.truncf %85 : vector<8x8xf32> to vector<8x8xbf16>
    %87 = vector.extract_strided_slice %20 {offsets = [0, 16], sizes = [8, 8], strides = [1, 1]} : vector<8x32xf32> to vector<8x8xf32>
    %88 = arith.truncf %87 : vector<8x8xf32> to vector<8x8xbf16>
    %cst_43 = arith.constant dense<0.000000e+00> : vector<8x8xf32>
    %89 = tpu.matmul %84, %86, %cst_43 {dimension_numbers = #tpu.dot_dimension_numbers<[1], [1], [0], [0], [0, 0, 1, 0], [], []>} : vector<8x8xbf16>, vector<8x8xbf16>, vector<8x8xf32> -> vector<8x8xf32>
    %cst_44 = arith.constant 0.353553385 : f32
    %90 = vector.broadcast %cst_44 : f32 to vector<8x8xf32>
    %91 = arith.mulf %89, %90 : vector<8x8xf32>
    %92 = arith.addf %91, %27 : vector<8x8xf32>
    %cst_45 = arith.constant dense<0xFF800000> : vector<8xf32>
    %93 = vector.multi_reduction <maximumf>, %92, %cst_45 [1] : vector<8x8xf32> to vector<8xf32>
    %94 = vector.shape_cast %93 : vector<8xf32> to vector<8x1xf32>
    %95 = vector.broadcast %94 : vector<8x1xf32> to vector<8x8xf32>
    %96 = arith.subf %92, %95 : vector<8x8xf32>
    %97 = math.exp %96 : vector<8x8xf32>
    %cst_46 = arith.constant dense<0.000000e+00> : vector<8xf32>
    %98 = vector.multi_reduction <add>, %97, %cst_46 [1] : vector<8x8xf32> to vector<8xf32>
    %99 = vector.shape_cast %98 : vector<8xf32> to vector<8x1xf32>
    %100 = tpu.reciprocal %99 {approx = true} : vector<8x1xf32> -> vector<8x1xf32>
    %101 = vector.broadcast %100 : vector<8x1xf32> to vector<8x8xf32>
    %102 = arith.mulf %97, %101 : vector<8x8xf32>
    %103 = arith.truncf %102 : vector<8x8xf32> to vector<8x8xbf16>
    %cst_47 = arith.constant dense<0.000000e+00> : vector<8x8xf32>
    %104 = tpu.matmul %103, %88, %cst_47 {dimension_numbers = #tpu.dot_dimension_numbers<[1], [0], [0], [1], [0, 0, 1, 1], [], []>} : vector<8x8xbf16>, vector<8x8xbf16>, vector<8x8xf32> -> vector<8x8xf32>
    %105 = arith.truncf %104 : vector<8x8xf32> to vector<8x8xbf16>
    %c2 = arith.constant 2 : index
    %c0_48 = arith.constant 0 : index
    %c0_49 = arith.constant 0 : index
    %106 = vector.load %arg11[%c2, %c0_48, %c0_49] : memref<4x8x32xbf16, #tpu.memory_space<vmem>>, vector<1x8x32xbf16>
    %107 = vector.shape_cast %106 : vector<1x8x32xbf16> to vector<8x32xbf16>
    %cst_50 = arith.constant dense<0.000000e+00> : vector<8x32xf32>
    %108 = tpu.matmul %105, %107, %cst_50 {dimension_numbers = #tpu.dot_dimension_numbers<[1], [0], [0], [1], [0, 0, 1, 1], [], []>} : vector<8x8xbf16>, vector<8x32xbf16>, vector<8x32xf32> -> vector<8x32xf32>
    %109 = arith.addf %82, %108 : vector<8x32xf32>
    %110 = vector.extract_strided_slice %10 {offsets = [0, 24], sizes = [8, 8], strides = [1, 1]} : vector<8x32xf32> to vector<8x8xf32>
    %111 = arith.truncf %110 : vector<8x8xf32> to vector<8x8xbf16>
    %112 = vector.extract_strided_slice %15 {offsets = [0, 24], sizes = [8, 8], strides = [1, 1]} : vector<8x32xf32> to vector<8x8xf32>
    %113 = arith.truncf %112 : vector<8x8xf32> to vector<8x8xbf16>
    %114 = vector.extract_strided_slice %20 {offsets = [0, 24], sizes = [8, 8], strides = [1, 1]} : vector<8x32xf32> to vector<8x8xf32>
    %115 = arith.truncf %114 : vector<8x8xf32> to vector<8x8xbf16>
    %cst_51 = arith.constant dense<0.000000e+00> : vector<8x8xf32>
    %116 = tpu.matmul %111, %113, %cst_51 {dimension_numbers = #tpu.dot_dimension_numbers<[1], [1], [0], [0], [0, 0, 1, 0], [], []>} : vector<8x8xbf16>, vector<8x8xbf16>, vector<8x8xf32> -> vector<8x8xf32>
    %cst_52 = arith.constant 0.353553385 : f32
    %117 = vector.broadcast %cst_52 : f32 to vector<8x8xf32>
    %118 = arith.mulf %116, %117 : vector<8x8xf32>
    %119 = arith.addf %118, %27 : vector<8x8xf32>
    %cst_53 = arith.constant dense<0xFF800000> : vector<8xf32>
    %120 = vector.multi_reduction <maximumf>, %119, %cst_53 [1] : vector<8x8xf32> to vector<8xf32>
    %121 = vector.shape_cast %120 : vector<8xf32> to vector<8x1xf32>
    %122 = vector.broadcast %121 : vector<8x1xf32> to vector<8x8xf32>
    %123 = arith.subf %119, %122 : vector<8x8xf32>
    %124 = math.exp %123 : vector<8x8xf32>
    %cst_54 = arith.constant dense<0.000000e+00> : vector<8xf32>
    %125 = vector.multi_reduction <add>, %124, %cst_54 [1] : vector<8x8xf32> to vector<8xf32>
    %126 = vector.shape_cast %125 : vector<8xf32> to vector<8x1xf32>
    %127 = tpu.reciprocal %126 {approx = true} : vector<8x1xf32> -> vector<8x1xf32>
    %128 = vector.broadcast %127 : vector<8x1xf32> to vector<8x8xf32>
    %129 = arith.mulf %124, %128 : vector<8x8xf32>
    %130 = arith.truncf %129 : vector<8x8xf32> to vector<8x8xbf16>
    %cst_55 = arith.constant dense<0.000000e+00> : vector<8x8xf32>
    %131 = tpu.matmul %130, %115, %cst_55 {dimension_numbers = #tpu.dot_dimension_numbers<[1], [0], [0], [1], [0, 0, 1, 1], [], []>} : vector<8x8xbf16>, vector<8x8xbf16>, vector<8x8xf32> -> vector<8x8xf32>
    %132 = arith.truncf %131 : vector<8x8xf32> to vector<8x8xbf16>
    %c3 = arith.constant 3 : index
    %c0_56 = arith.constant 0 : index
    %c0_57 = arith.constant 0 : index
    %133 = vector.load %arg11[%c3, %c0_56, %c0_57] : memref<4x8x32xbf16, #tpu.memory_space<vmem>>, vector<1x8x32xbf16>
    %134 = vector.shape_cast %133 : vector<1x8x32xbf16> to vector<8x32xbf16>
    %cst_58 = arith.constant dense<0.000000e+00> : vector<8x32xf32>
    %135 = tpu.matmul %132, %134, %cst_58 {dimension_numbers = #tpu.dot_dimension_numbers<[1], [0], [0], [1], [0, 0, 1, 1], [], []>} : vector<8x8xbf16>, vector<8x32xbf16>, vector<8x32xf32> -> vector<8x32xf32>
    %136 = arith.addf %109, %135 : vector<8x32xf32>
    %c0_59 = arith.constant 0 : index
    %c0_60 = arith.constant 0 : index
    %137 = vector.load %arg12[%c0_59, %c0_60] : memref<1x32xf32, #tpu.memory_space<vmem>>, vector<1x32xf32>
    %138 = vector.broadcast %137 : vector<1x32xf32> to vector<8x32xf32>
    %139 = arith.addf %136, %138 : vector<8x32xf32>
    %140 = arith.addf %1, %139 : vector<8x32xf32>
    %c0_61 = arith.constant 0 : index
    %c0_62 = arith.constant 0 : index
    %141 = vector.load %arg13[%c0_61, %c0_62] : memref<1x32xf32, #tpu.memory_space<vmem>>, vector<1x32xf32>
    %c0_63 = arith.constant 0 : index
    %c0_64 = arith.constant 0 : index
    %142 = vector.load %arg14[%c0_63, %c0_64] : memref<1x32xf32, #tpu.memory_space<vmem>>, vector<1x32xf32>
    %cst_65 = arith.constant dense<0.000000e+00> : vector<8xf32>
    %143 = vector.multi_reduction <add>, %140, %cst_65 [1] : vector<8x32xf32> to vector<8xf32>
    %144 = vector.shape_cast %143 : vector<8xf32> to vector<8x1xf32>
    %cst_66 = arith.constant 3.200000e+01 : f32
    %145 = vector.broadcast %cst_66 : f32 to vector<8x1xf32>
    %146 = arith.divf %144, %145 : vector<8x1xf32>
    %147 = vector.broadcast %146 : vector<8x1xf32> to vector<8x32xf32>
    %148 = arith.subf %140, %147 : vector<8x32xf32>
    %149 = arith.mulf %148, %148 : vector<8x32xf32>
    %cst_67 = arith.constant dense<0.000000e+00> : vector<8xf32>
    %150 = vector.multi_reduction <add>, %149, %cst_67 [1] : vector<8x32xf32> to vector<8xf32>
    %151 = vector.shape_cast %150 : vector<8xf32> to vector<8x1xf32>
    %cst_68 = arith.constant 0.0322580636 : f32
    %152 = vector.broadcast %cst_68 : f32 to vector<8x1xf32>
    %153 = arith.mulf %151, %152 : vector<8x1xf32>
    %154 = math.sqrt %153 : vector<8x1xf32>
    %cst_69 = arith.constant 9.99999997E-7 : f32
    %155 = vector.broadcast %cst_69 : f32 to vector<8x1xf32>
    %156 = arith.addf %154, %155 : vector<8x1xf32>
    %157 = tpu.reciprocal %156 {approx = true} : vector<8x1xf32> -> vector<8x1xf32>
    %158 = vector.broadcast %146 : vector<8x1xf32> to vector<8x32xf32>
    %159 = arith.subf %140, %158 : vector<8x32xf32>
    %160 = vector.broadcast %141 : vector<1x32xf32> to vector<8x32xf32>
    %161 = arith.mulf %160, %159 : vector<8x32xf32>
    %162 = vector.broadcast %157 : vector<8x1xf32> to vector<8x32xf32>
    %163 = arith.mulf %161, %162 : vector<8x32xf32>
    %164 = vector.broadcast %142 : vector<1x32xf32> to vector<8x32xf32>
    %165 = arith.addf %163, %164 : vector<8x32xf32>
    %166 = arith.truncf %165 : vector<8x32xf32> to vector<8x32xbf16>
    %c0_70 = arith.constant 0 : index
    %c0_71 = arith.constant 0 : index
    %167 = vector.load %arg15[%c0_70, %c0_71] : memref<32x128xbf16, #tpu.memory_space<vmem>>, vector<32x128xbf16>
    %cst_72 = arith.constant dense<0.000000e+00> : vector<8x128xf32>
    %168 = tpu.matmul %166, %167, %cst_72 {dimension_numbers = #tpu.dot_dimension_numbers<[1], [0], [0], [1], [0, 0, 1, 1], [], []>} : vector<8x32xbf16>, vector<32x128xbf16>, vector<8x128xf32> -> vector<8x128xf32>
    %c0_73 = arith.constant 0 : index
    %c0_74 = arith.constant 0 : index
    %169 = vector.load %arg16[%c0_73, %c0_74] : memref<1x128xf32, #tpu.memory_space<vmem>>, vector<1x128xf32>
    %170 = vector.broadcast %169 : vector<1x128xf32> to vector<8x128xf32>
    %171 = arith.addf %168, %170 : vector<8x128xf32>
    %cst_75 = arith.constant 0.000000e+00 : f32
    %172 = vector.broadcast %cst_75 : f32 to vector<8x128xf32>
    %173 = arith.maximumf %171, %172 : vector<8x128xf32>
    %174 = arith.truncf %173 : vector<8x128xf32> to vector<8x128xbf16>
    %c0_76 = arith.constant 0 : index
    %c0_77 = arith.constant 0 : index
    %175 = vector.load %arg17[%c0_76, %c0_77] : memref<128x32xbf16, #tpu.memory_space<vmem>>, vector<128x32xbf16>
    %cst_78 = arith.constant dense<0.000000e+00> : vector<8x32xf32>
    %176 = tpu.matmul %174, %175, %cst_78 {dimension_numbers = #tpu.dot_dimension_numbers<[1], [0], [0], [1], [0, 0, 1, 1], [], []>} : vector<8x128xbf16>, vector<128x32xbf16>, vector<8x32xf32> -> vector<8x32xf32>
    %c0_79 = arith.constant 0 : index
    %c0_80 = arith.constant 0 : index
    %177 = vector.load %arg18[%c0_79, %c0_80] : memref<1x32xf32, #tpu.memory_space<vmem>>, vector<1x32xf32>
    %178 = vector.broadcast %177 : vector<1x32xf32> to vector<8x32xf32>
    %179 = arith.addf %176, %178 : vector<8x32xf32>
    %180 = arith.addf %165, %179 : vector<8x32xf32>
    %c0_81 = arith.constant 0 : index
    %c0_82 = arith.constant 0 : index
    %181 = vector.load %arg19[%c0_81, %c0_82] : memref<1x32xf32, #tpu.memory_space<vmem>>, vector<1x32xf32>
    %c0_83 = arith.constant 0 : index
    %c0_84 = arith.constant 0 : index
    %182 = vector.load %arg20[%c0_83, %c0_84] : memref<1x32xf32, #tpu.memory_space<vmem>>, vector<1x32xf32>
    %cst_85 = arith.constant dense<0.000000e+00> : vector<8xf32>
    %183 = vector.multi_reduction <add>, %180, %cst_85 [1] : vector<8x32xf32> to vector<8xf32>
    %184 = vector.shape_cast %183 : vector<8xf32> to vector<8x1xf32>
    %cst_86 = arith.constant 3.200000e+01 : f32
    %185 = vector.broadcast %cst_86 : f32 to vector<8x1xf32>
    %186 = arith.divf %184, %185 : vector<8x1xf32>
    %187 = vector.broadcast %186 : vector<8x1xf32> to vector<8x32xf32>
    %188 = arith.subf %180, %187 : vector<8x32xf32>
    %189 = arith.mulf %188, %188 : vector<8x32xf32>
    %cst_87 = arith.constant dense<0.000000e+00> : vector<8xf32>
    %190 = vector.multi_reduction <add>, %189, %cst_87 [1] : vector<8x32xf32> to vector<8xf32>
    %191 = vector.shape_cast %190 : vector<8xf32> to vector<8x1xf32>
    %cst_88 = arith.constant 0.0322580636 : f32
    %192 = vector.broadcast %cst_88 : f32 to vector<8x1xf32>
    %193 = arith.mulf %191, %192 : vector<8x1xf32>
    %194 = math.sqrt %193 : vector<8x1xf32>
    %cst_89 = arith.constant 9.99999997E-7 : f32
    %195 = vector.broadcast %cst_89 : f32 to vector<8x1xf32>
    %196 = arith.addf %194, %195 : vector<8x1xf32>
    %197 = tpu.reciprocal %196 {approx = true} : vector<8x1xf32> -> vector<8x1xf32>
    %198 = vector.broadcast %186 : vector<8x1xf32> to vector<8x32xf32>
    %199 = arith.subf %180, %198 : vector<8x32xf32>
    %200 = vector.broadcast %181 : vector<1x32xf32> to vector<8x32xf32>
    %201 = arith.mulf %200, %199 : vector<8x32xf32>
    %202 = vector.broadcast %197 : vector<8x1xf32> to vector<8x32xf32>
    %203 = arith.mulf %201, %202 : vector<8x32xf32>
    %204 = vector.broadcast %182 : vector<1x32xf32> to vector<8x32xf32>
    %205 = arith.addf %203, %204 : vector<8x32xf32>
    %c0_90 = arith.constant 0 : index
    %c0_91 = arith.constant 0 : index
    %c0_92 = arith.constant 0 : index
    %206 = vector.load %arg21[%c0_90, %c0_91, %c0_92] : memref<1x8x32xf32, #tpu.memory_space<vmem>>, vector<1x8x32xf32>
    %207 = vector.shape_cast %206 : vector<1x8x32xf32> to vector<8x32xf32>
    %208 = vector.shape_cast %205 : vector<8x32xf32> to vector<1x8x32xf32>
    tpu.vector_store %arg21[%c0_90, %c0_91, %c0_92], %208 {strides = array<i32>} : memref<1x8x32xf32, #tpu.memory_space<vmem>>, vector<1x8x32xf32>,
    return
  }
  func.func @transform_0(%arg0: i32, %arg1: i32) -> (i32, i32, i32) {
    %c0_i32 = arith.constant 0 : i32
    %c0_i32_0 = arith.constant 0 : i32
    return %arg0, %arg1, %c0_i32 : i32, i32, i32
  }
  func.func @transform_1(%arg0: i32, %arg1: i32) -> (i32, i32, i32) {
    %c0_i32 = arith.constant 0 : i32
    %c0_i32_0 = arith.constant 0 : i32
    %c0_i32_1 = arith.constant 0 : i32
    return %arg0, %c0_i32, %c0_i32_0 : i32, i32, i32
  }
  func.func @transform_2(%arg0: i32, %arg1: i32) -> (i32, i32, i32) {
    %c0_i32 = arith.constant 0 : i32
    %c0_i32_0 = arith.constant 0 : i32
    return %arg0, %arg1, %c0_i32 : i32, i32, i32
  }
  func.func @transform_3(%arg0: i32, %arg1: i32) -> (i32, i32) {
    %c0_i32 = arith.constant 0 : i32
    %c0_i32_0 = arith.constant 0 : i32
    %c0_i32_1 = arith.constant 0 : i32
    return %c0_i32, %c0_i32_0 : i32, i32
  }
  func.func @transform_4(%arg0: i32, %arg1: i32) -> (i32, i32) {
    %c0_i32 = arith.constant 0 : i32
    %c0_i32_0 = arith.constant 0 : i32
    %c0_i32_1 = arith.constant 0 : i32
    return %c0_i32, %c0_i32_0 : i32, i32
  }
  func.func @transform_5(%arg0: i32, %arg1: i32) -> (i32, i32) {
    %c0_i32 = arith.constant 0 : i32
    %c0_i32_0 = arith.constant 0 : i32
    %c0_i32_1 = arith.constant 0 : i32
    return %c0_i32, %c0_i32_0 : i32, i32
  }
  func.func @transform_6(%arg0: i32, %arg1: i32) -> (i32, i32) {
    %c0_i32 = arith.constant 0 : i32
    %c0_i32_0 = arith.constant 0 : i32
    %c0_i32_1 = arith.constant 0 : i32
    return %c0_i32, %c0_i32_0 : i32, i32
  }
  func.func @transform_7(%arg0: i32, %arg1: i32) -> (i32, i32) {
    %c0_i32 = arith.constant 0 : i32
    %c0_i32_0 = arith.constant 0 : i32
    %c0_i32_1 = arith.constant 0 : i32
    return %c0_i32, %c0_i32_0 : i32, i32
  }
  func.func @transform_8(%arg0: i32, %arg1: i32) -> (i32, i32) {
    %c0_i32 = arith.constant 0 : i32
    %c0_i32_0 = arith.constant 0 : i32
    %c0_i32_1 = arith.constant 0 : i32
    return %c0_i32, %c0_i32_0 : i32, i32
  }
  func.func @transform_9(%arg0: i32, %arg1: i32) -> (i32, i32, i32) {
    %c0_i32 = arith.constant 0 : i32
    %c0_i32_0 = arith.constant 0 : i32
    %c0_i32_1 = arith.constant 0 : i32
    %c0_i32_2 = arith.constant 0 : i32
    return %c0_i32, %c0_i32_0, %c0_i32_1 : i32, i32, i32
  }
  func.func @transform_10(%arg0: i32, %arg1: i32) -> (i32, i32) {
    %c0_i32 = arith.constant 0 : i32
    %c0_i32_0 = arith.constant 0 : i32
    %c0_i32_1 = arith.constant 0 : i32
    return %c0_i32, %c0_i32_0 : i32, i32
  }
  func.func @transform_11(%arg0: i32, %arg1: i32) -> (i32, i32) {
    %c0_i32 = arith.constant 0 : i32
    %c0_i32_0 = arith.constant 0 : i32
    %c0_i32_1 = arith.constant 0 : i32
    return %c0_i32, %c0_i32_0 : i32, i32
  }
  func.func @transform_12(%arg0: i32, %arg1: i32) -> (i32, i32) {
    %c0_i32 = arith.constant 0 : i32
    %c0_i32_0 = arith.constant 0 : i32
    %c0_i32_1 = arith.constant 0 : i32
    return %c0_i32, %c0_i32_0 : i32, i32
  }
  func.func @transform_13(%arg0: i32, %arg1: i32) -> (i32, i32) {
    %c0_i32 = arith.constant 0 : i32
    %c0_i32_0 = arith.constant 0 : i32
    %c0_i32_1 = arith.constant 0 : i32
    return %c0_i32, %c0_i32_0 : i32, i32
  }
  func.func @transform_14(%arg0: i32, %arg1: i32) -> (i32, i32) {
    %c0_i32 = arith.constant 0 : i32
    %c0_i32_0 = arith.constant 0 : i32
    %c0_i32_1 = arith.constant 0 : i32
    return %c0_i32, %c0_i32_0 : i32, i32
  }
  func.func @transform_15(%arg0: i32, %arg1: i32) -> (i32, i32) {
    %c0_i32 = arith.constant 0 : i32
    %c0_i32_0 = arith.constant 0 : i32
    %c0_i32_1 = arith.constant 0 : i32
    return %c0_i32, %c0_i32_0 : i32, i32
  }
  func.func @transform_16(%arg0: i32, %arg1: i32) -> (i32, i32) {
    %c0_i32 = arith.constant 0 : i32
    %c0_i32_0 = arith.constant 0 : i32
    %c0_i32_1 = arith.constant 0 : i32
    return %c0_i32, %c0_i32_0 : i32, i32
  }
  func.func @transform_17(%arg0: i32, %arg1: i32) -> (i32, i32) {
    %c0_i32 = arith.constant 0 : i32
    %c0_i32_0 = arith.constant 0 : i32
    %c0_i32_1 = arith.constant 0 : i32
    return %c0_i32, %c0_i32_0 : i32, i32
  }
  func.func @transform_18(%arg0: i32, %arg1: i32) -> (i32, i32) {
    %c0_i32 = arith.constant 0 : i32
    %c0_i32_0 = arith.constant 0 : i32
    %c0_i32_1 = arith.constant 0 : i32
    return %c0_i32, %c0_i32_0 : i32, i32
  }
  func.func @transform_19(%arg0: i32, %arg1: i32) -> (i32, i32, i32) {
    %c0_i32 = arith.constant 0 : i32
    %c0_i32_0 = arith.constant 0 : i32
    return %arg0, %arg1, %c0_i32 : i32, i32, i32
  }
}

</mosaic_0001>

<llo_original>
// kernel: tpu_custom_call.1
$region0: #{tpu_custom_call.1}
  #allocation0 [shape = 'u32[]', space=smem, size = 0x4, offset = 0x4, fixed_abs, tag = 'smem constant byte address 0x4 - core index']
  #allocation1 [shape = 'u32[72,128]{1,0:T(1,128)}', space=vmem, size = 0x9000, scoped, tag = 'internal scratch']
  %s0 = inlined_call_operand.vmem [shape: f32[2,8,32], index: 0, kind: input, shape index: {}]
  %s1 = inlined_call_operand.vmem [shape: f32[2,8,32], index: 1, kind: input, shape index: {}]
  %s2 = inlined_call_operand.vmem [shape: f32[2,8,8], index: 2, kind: input, shape index: {}]
  %s3 = inlined_call_operand.vmem [shape: bf16[32,32], index: 3, kind: input, shape index: {}]
  %s4 = inlined_call_operand.vmem [shape: f32[1,32], index: 4, kind: input, shape index: {}]
  %s5 = inlined_call_operand.vmem [shape: bf16[32,32], index: 5, kind: input, shape index: {}]
  %s6 = inlined_call_operand.vmem [shape: f32[1,32], index: 6, kind: input, shape index: {}]
  %s7 = inlined_call_operand.hbm [shape: bf16[32,32], index: 7, kind: input, shape index: {}]
  %s8 = inlined_call_operand.vmem [shape: f32[1,32], index: 8, kind: input, shape index: {}]
  %s9 = inlined_call_operand.hbm [shape: bf16[4,8,32], index: 9, kind: input, shape index: {}]
  %s10 = inlined_call_operand.vmem [shape: f32[1,32], index: 10, kind: input, shape index: {}]
  %s11 = inlined_call_operand.vmem [shape: f32[1,32], index: 11, kind: input, shape index: {}]
  %s12 = inlined_call_operand.vmem [shape: f32[1,32], index: 12, kind: input, shape index: {}]
  %s13 = inlined_call_operand.hbm [shape: bf16[32,128], index: 13, kind: input, shape index: {}]
  %s14 = inlined_call_operand.vmem [shape: f32[1,128], index: 14, kind: input, shape index: {}]
  %s15 = inlined_call_operand.vmem [shape: bf16[128,32], index: 15, kind: input, shape index: {}]
  %s16 = inlined_call_operand.vmem [shape: f32[1,32], index: 16, kind: input, shape index: {}]
  %s17 = inlined_call_operand.vmem [shape: f32[1,32], index: 17, kind: input, shape index: {}]
  %s18 = inlined_call_operand.vmem [shape: f32[1,32], index: 18, kind: input, shape index: {}]
  %s19 = inlined_call_operand.hbm [shape: f32[2,8,32], index: 19, kind: output, shape index: {}]
  %s20 = sld [smem:[#allocation0]]
  $region121: #{tpu_custom_call.1} parent=0
    _
  %s22 = ssub.s32 1, %s20
  %s23 = scalar_select 0, %s22, %s20
  $region1: #{tpu_custom_call.1} parent=0
    #allocation2 [shape = 'u8[8192]{0}', space=vmem, size = 0x2000, scoped, tag = 'input window, operand 7, single buffered']
    #allocation3 [shape = 's32[2]{0}', space=sflag, size = 0x8, scoped, tag = 'scoped memory for tpu_custom_call.1']
    #allocation4 [shape = 's32[2]{0}', space=sflag, size = 0x8, scoped, tag = 'scoped memory for tpu_custom_call.1']
    #allocation5 [shape = 'u8[8192]{0}', space=vmem, size = 0x2000, scoped, tag = 'input window, operand 9, single buffered']
    #allocation6 [shape = 's32[1]{0}', space=sflag, size = 0x4, scoped, tag = 'scoped memory for tpu_custom_call.1']
    #allocation7 [shape = 'u8[8192]{0}', space=vmem, size = 0x2000, scoped, tag = 'input window, operand 13, single buffered']
    #allocation8 [shape = 'u8[8192]{0}', space=vmem, size = 0x2000, scoped, tag = 'output window, operand 0']
    %24 = vsyncpa [#allocation3], 0
    %25 = vsyncpa [#allocation6], 0
    %26 = vsyncpa [#allocation4], 0
    %s27 = scalar_lea.sflag [#allocation4], 1
    %28 = vsyncpa %s27, 0
    loop: start=0, step=1, limit=4
    $region2: #{tpu_custom_call.1} parent=1 // loop_pre_header
      _
    $region3: #{tpu_custom_call.1} parent=1 // loop_header
      %s30 = sphi 0, %s34
      %p31 = scmp.ge.s32.totalorder %s30, 4
      %s37 = sphi 0, %s49
      %s38 = sphi 0, %s45
      %s39 = sphi 0, %s37
      %s40 = sphi 0, %s38
      %s41 = sphi 0, %s39
      %s42 = sphi 0, %s40
      %s54 = sphi 0, %s56
      %s57 = sphi 0, %s54
      %s58 = sphi 0, %s57
      %s74 = sphi 0, %s58
      %s80 = sphi 0, %s82
      %s83 = sphi 0, %s80
      %s84 = sphi 0, %s83
      %s100 = sphi 0, %s84
      %s108 = sphi 0, %s110
      %s111 = sphi 0, %s108
      %s112 = sphi 0, %s111
      %s128 = sphi 0, %s112
      %s132 = sphi 0, %s132
      %s134 = sphi 0, %s132
      %s135 = sphi 0, %s134
      %s149 = sphi 0, %s135
      %s153 = sphi 0, %s153
      %s155 = sphi 0, %s153
      %s156 = sphi 0, %s155
      %s170 = sphi 0, %s156
      %s174 = sphi 0, %s174
      %s176 = sphi 0, %s174
      %s177 = sphi 0, %s176
      %s191 = sphi 0, %s177
      %s195 = sphi 0, %s195
      %s197 = sphi 0, %s195
      %s198 = sphi 0, %s197
      %s212 = sphi 0, %s198
      %s216 = sphi 0, %s216
      %s218 = sphi 0, %s216
      %s219 = sphi 0, %s218
      %s233 = sphi 0, %s219
      %s237 = sphi 0, %s237
      %s239 = sphi 0, %s237
      %s240 = sphi 0, %s239
      %s254 = sphi 0, %s240
      %s258 = sphi 0, %s258
      %s260 = sphi 0, %s258
      %s261 = sphi 0, %s260
      %s275 = sphi 0, %s261
      %s279 = sphi 0, %s279
      %s281 = sphi 0, %s279
      %s282 = sphi 0, %s281
      %s296 = sphi 0, %s282
      %s300 = sphi 0, %s300
      %s302 = sphi 0, %s300
      %s303 = sphi 0, %s302
      %s317 = sphi 0, %s303
      %s321 = sphi 0, %s321
      %s323 = sphi 0, %s321
      %s324 = sphi 0, %s323
      %s338 = sphi 0, %s324
      %s342 = sphi 0, %s342
      %s344 = sphi 0, %s342
      %s345 = sphi 0, %s344
      %s359 = sphi 0, %s345
      %s363 = sphi 0, %s363
      %s365 = sphi 0, %s363
      %s366 = sphi 0, %s365
      %s380 = sphi 0, %s366
      %s384 = sphi 0, %s384
      %s386 = sphi 0, %s384
      %s387 = sphi 0, %s386
      %s401 = sphi 0, %s387
      %s405 = sphi 0, %s405
      %s407 = sphi 0, %s405
      %s408 = sphi 0, %s407
      %s422 = sphi 0, %s408
      %s426 = sphi 0, %s426
      %s428 = sphi 0, %s426
      %s429 = sphi 0, %s428
      %s443 = sphi 0, %s429
      %s447 = sphi 0, %s447
      %s449 = sphi 0, %s447
      %s450 = sphi 0, %s449
      %s464 = sphi 0, %s450
      %s472 = sphi 0, %s474
      %s475 = sphi 0, %s472
      %s476 = sphi 0, %s475
      %s492 = sphi 0, %s476
    $region4: #{tpu_custom_call.1} parent=1 // loop_header_branch
      %33 = sbr.rel (%p31) target = $region8
    $region5: #{tpu_custom_call.1} parent=1 // loop_body
      %s35 = ssub.s32 %s30, 1
      %s36 = ssub.s32 %s30, 2
      %s43 = sadd.s32 1, %s38
      %p44 = scmp.ge.s32.totalorder %s43, 1
      %s45 = scalar_select %p44, 0, %s43
      %s46 = sadd.s32 1, %s37
      %s47 = scalar_select %p44, %s46, %s37
      %p48 = scmp.ge.s32.totalorder %s47, 2
      %s49 = scalar_select %p48, 0, %s47
      %s50 = ssub.s32 %s37, %s49
      %s51 = ssub.s32 %s38, %s45
      %s52 = sor.u32 %s50, %s51
      %p53 = scmp.eq.s32.totalorder %s52, 0
      %s55 = sadd.s32 %s54, 1
      %s56 = scalar_select %p53, %s54, %s55
      %p59 = pneg %p53
      %p60 = scmp.eq.s32.totalorder %s30, 1
      %p61 = por %p59, %p60
      %p62 = scmp.ne.s32.totalorder %s54, %s57
      %p63 = scmp.eq.s32.totalorder %s30, 0
      %p64 = por %p62, %p63
      %p65 = scmp.ne.s32.totalorder %s54, %s57
      %p66 = scmp.eq.s32.totalorder %s35, 1
      %p67 = por %p65, %p66
      %p68 = scmp.ne.s32.totalorder %s57, %s58
      %p69 = scmp.eq.s32.totalorder %s35, 0
      %p70 = por %p68, %p69
      %p71 = scmp.ne.s32.totalorder %s57, %s58
      %p72 = scmp.eq.s32.totalorder %s36, 1
      %p73 = por %p71, %p72
      %p75 = scmp.ne.s32.totalorder %s58, %s74
      %p76 = scmp.eq.s32.totalorder %s36, 0
      %p77 = por %p75, %p76
      %s78 = ssub.s32 %s37, %s49
      %p79 = scmp.eq.s32.totalorder %s78, 0
      %s81 = sadd.s32 %s80, 1
      %s82 = scalar_select %p79, %s80, %s81
      %p85 = pneg %p79
      %p86 = scmp.eq.s32.totalorder %s30, 1
      %p87 = por %p85, %p86
      %p88 = scmp.ne.s32.totalorder %s80, %s83
      %p89 = scmp.eq.s32.totalorder %s30, 0
      %p90 = por %p88, %p89
      %p91 = scmp.ne.s32.totalorder %s80, %s83
      %p92 = scmp.eq.s32.totalorder %s35, 1
      %p93 = por %p91, %p92
      %p94 = scmp.ne.s32.totalorder %s83, %s84
      %p95 = scmp.eq.s32.totalorder %s35, 0
      %p96 = por %p94, %p95
      %p97 = scmp.ne.s32.totalorder %s83, %s84
      %p98 = scmp.eq.s32.totalorder %s36, 1
      %p99 = por %p97, %p98
      %p101 = scmp.ne.s32.totalorder %s84, %s100
      %p102 = scmp.eq.s32.totalorder %s36, 0
      %p103 = por %p101, %p102
      %s104 = ssub.s32 %s37, %s49
      %s105 = ssub.s32 %s38, %s45
      %s106 = sor.u32 %s104, %s105
      %p107 = scmp.eq.s32.totalorder %s106, 0
      %s109 = sadd.s32 %s108, 1
      %s110 = scalar_select %p107, %s108, %s109
      %p113 = pneg %p107
      %p114 = scmp.eq.s32.totalorder %s30, 1
      %p115 = por %p113, %p114
      %p116 = scmp.ne.s32.totalorder %s108, %s111
      %p117 = scmp.eq.s32.totalorder %s30, 0
      %p118 = por %p116, %p117
      %p119 = scmp.ne.s32.totalorder %s108, %s111
      %p120 = scmp.eq.s32.totalorder %s35, 1
      %p121 = por %p119, %p120
      %p122 = scmp.ne.s32.totalorder %s111, %s112
      %p123 = scmp.eq.s32.totalorder %s35, 0
      %p124 = por %p122, %p123
      %p125 = scmp.ne.s32.totalorder %s111, %s112
      %p126 = scmp.eq.s32.totalorder %s36, 1
      %p127 = por %p125, %p126
      %p129 = scmp.ne.s32.totalorder %s112, %s128
      %p130 = scmp.eq.s32.totalorder %s36, 0
      %p131 = por %p129, %p130
      %s133 = sadd.s32 %s132, 1
      %p136 = scmp.eq.s32.totalorder %s30, 1
      %p137 = scmp.ne.s32.totalorder %s132, %s134
      %p138 = scmp.eq.s32.totalorder %s30, 0
      %p139 = por %p137, %p138
      %p140 = scmp.ne.s32.totalorder %s132, %s134
      %p141 = scmp.eq.s32.totalorder %s35, 1
      %p142 = por %p140, %p141
      %p143 = scmp.ne.s32.totalorder %s134, %s135
      %p144 = scmp.eq.s32.totalorder %s35, 0
      %p145 = por %p143, %p144
      %p146 = scmp.ne.s32.totalorder %s134, %s135
      %p147 = scmp.eq.s32.totalorder %s36, 1
      %p148 = por %p146, %p147
      %p150 = scmp.ne.s32.totalorder %s135, %s149
      %p151 = scmp.eq.s32.totalorder %s36, 0
      %p152 = por %p150, %p151
      %s154 = sadd.s32 %s153, 1
      %p157 = scmp.eq.s32.totalorder %s30, 1
      %p158 = scmp.ne.s32.totalorder %s153, %s155
      %p159 = scmp.eq.s32.totalorder %s30, 0
      %p160 = por %p158, %p159
      %p161 = scmp.ne.s32.totalorder %s153, %s155
      %p162 = scmp.eq.s32.totalorder %s35, 1
      %p163 = por %p161, %p162
      %p164 = scmp.ne.s32.totalorder %s155, %s156
      %p165 = scmp.eq.s32.totalorder %s35, 0
      %p166 = por %p164, %p165
      %p167 = scmp.ne.s32.totalorder %s155, %s156
      %p168 = scmp.eq.s32.totalorder %s36, 1
      %p169 = por %p167, %p168
      %p171 = scmp.ne.s32.totalorder %s156, %s170
      %p172 = scmp.eq.s32.totalorder %s36, 0
      %p173 = por %p171, %p172
      %s175 = sadd.s32 %s174, 1
      %p178 = scmp.eq.s32.totalorder %s30, 1
      %p179 = scmp.ne.s32.totalorder %s174, %s176
      %p180 = scmp.eq.s32.totalorder %s30, 0
      %p181 = por %p179, %p180
      %p182 = scmp.ne.s32.totalorder %s174, %s176
      %p183 = scmp.eq.s32.totalorder %s35, 1
      %p184 = por %p182, %p183
      %p185 = scmp.ne.s32.totalorder %s176, %s177
      %p186 = scmp.eq.s32.totalorder %s35, 0
      %p187 = por %p185, %p186
      %p188 = scmp.ne.s32.totalorder %s176, %s177
      %p189 = scmp.eq.s32.totalorder %s36, 1
      %p190 = por %p188, %p189
      %p192 = scmp.ne.s32.totalorder %s177, %s191
      %p193 = scmp.eq.s32.totalorder %s36, 0
      %p194 = por %p192, %p193
      %s196 = sadd.s32 %s195, 1
      %p199 = scmp.eq.s32.totalorder %s30, 1
      %p200 = scmp.ne.s32.totalorder %s195, %s197
      %p201 = scmp.eq.s32.totalorder %s30, 0
      %p202 = por %p200, %p201
      %p203 = scmp.ne.s32.totalorder %s195, %s197
      %p204 = scmp.eq.s32.totalorder %s35, 1
      %p205 = por %p203, %p204
      %p206 = scmp.ne.s32.totalorder %s197, %s198
      %p207 = scmp.eq.s32.totalorder %s35, 0
      %p208 = por %p206, %p207
      %p209 = scmp.ne.s32.totalorder %s197, %s198
      %p210 = scmp.eq.s32.totalorder %s36, 1
      %p211 = por %p209, %p210
      %p213 = scmp.ne.s32.totalorder %s198, %s212
      %p214 = scmp.eq.s32.totalorder %s36, 0
      %p215 = por %p213, %p214
      %s217 = sadd.s32 %s216, 1
      %p220 = scmp.eq.s32.totalorder %s30, 1
      %p221 = scmp.ne.s32.totalorder %s216, %s218
      %p222 = scmp.eq.s32.totalorder %s30, 0
      %p223 = por %p221, %p222
      %p224 = scmp.ne.s32.totalorder %s216, %s218
      %p225 = scmp.eq.s32.totalorder %s35, 1
      %p226 = por %p224, %p225
      %p227 = scmp.ne.s32.totalorder %s218, %s219
      %p228 = scmp.eq.s32.totalorder %s35, 0
      %p229 = por %p227, %p228
      %p230 = scmp.ne.s32.totalorder %s218, %s219
      %p231 = scmp.eq.s32.totalorder %s36, 1
      %p232 = por %p230, %p231
      %p234 = scmp.ne.s32.totalorder %s219, %s233
      %p235 = scmp.eq.s32.totalorder %s36, 0
      %p236 = por %p234, %p235
      %s238 = sadd.s32 %s237, 1
      %p241 = scmp.eq.s32.totalorder %s30, 1
      %p242 = scmp.ne.s32.totalorder %s237, %s239
      %p243 = scmp.eq.s32.totalorder %s30, 0
      %p244 = por %p242, %p243
      %p245 = scmp.ne.s32.totalorder %s237, %s239
      %p246 = scmp.eq.s32.totalorder %s35, 1
      %p247 = por %p245, %p246
      %p248 = scmp.ne.s32.totalorder %s239, %s240
      %p249 = scmp.eq.s32.totalorder %s35, 0
      %p250 = por %p248, %p249
      %p251 = scmp.ne.s32.totalorder %s239, %s240
      %p252 = scmp.eq.s32.totalorder %s36, 1
      %p253 = por %p251, %p252
      %p255 = scmp.ne.s32.totalorder %s240, %s254
      %p256 = scmp.eq.s32.totalorder %s36, 0
      %p257 = por %p255, %p256
      %s259 = sadd.s32 %s258, 1
      %p262 = scmp.eq.s32.totalorder %s30, 1
      %p263 = scmp.ne.s32.totalorder %s258, %s260
      %p264 = scmp.eq.s32.totalorder %s30, 0
      %p265 = por %p263, %p264
      %p266 = scmp.ne.s32.totalorder %s258, %s260
      %p267 = scmp.eq.s32.totalorder %s35, 1
      %p268 = por %p266, %p267
      %p269 = scmp.ne.s32.totalorder %s260, %s261
      %p270 = scmp.eq.s32.totalorder %s35, 0
      %p271 = por %p269, %p270
      %p272 = scmp.ne.s32.totalorder %s260, %s261
      %p273 = scmp.eq.s32.totalorder %s36, 1
      %p274 = por %p272, %p273
      %p276 = scmp.ne.s32.totalorder %s261, %s275
      %p277 = scmp.eq.s32.totalorder %s36, 0
      %p278 = por %p276, %p277
      %s280 = sadd.s32 %s279, 1
      %p283 = scmp.eq.s32.totalorder %s30, 1
      %p284 = scmp.ne.s32.totalorder %s279, %s281
      %p285 = scmp.eq.s32.totalorder %s30, 0
      %p286 = por %p284, %p285
      %p287 = scmp.ne.s32.totalorder %s279, %s281
      %p288 = scmp.eq.s32.totalorder %s35, 1
      %p289 = por %p287, %p288
      %p290 = scmp.ne.s32.totalorder %s281, %s282
      %p291 = scmp.eq.s32.totalorder %s35, 0
      %p292 = por %p290, %p291
      %p293 = scmp.ne.s32.totalorder %s281, %s282
      %p294 = scmp.eq.s32.totalorder %s36, 1
      %p295 = por %p293, %p294
      %p297 = scmp.ne.s32.totalorder %s282, %s296
      %p298 = scmp.eq.s32.totalorder %s36, 0
      %p299 = por %p297, %p298
      %s301 = sadd.s32 %s300, 1
      %p304 = scmp.eq.s32.totalorder %s30, 1
      %p305 = scmp.ne.s32.totalorder %s300, %s302
      %p306 = scmp.eq.s32.totalorder %s30, 0
      %p307 = por %p305, %p306
      %p308 = scmp.ne.s32.totalorder %s300, %s302
      %p309 = scmp.eq.s32.totalorder %s35, 1
      %p310 = por %p308, %p309
      %p311 = scmp.ne.s32.totalorder %s302, %s303
      %p312 = scmp.eq.s32.totalorder %s35, 0
      %p313 = por %p311, %p312
      %p314 = scmp.ne.s32.totalorder %s302, %s303
      %p315 = scmp.eq.s32.totalorder %s36, 1
      %p316 = por %p314, %p315
      %p318 = scmp.ne.s32.totalorder %s303, %s317
      %p319 = scmp.eq.s32.totalorder %s36, 0
      %p320 = por %p318, %p319
      %s322 = sadd.s32 %s321, 1
      %p325 = scmp.eq.s32.totalorder %s30, 1
      %p326 = scmp.ne.s32.totalorder %s321, %s323
      %p327 = scmp.eq.s32.totalorder %s30, 0
      %p328 = por %p326, %p327
      %p329 = scmp.ne.s32.totalorder %s321, %s323
      %p330 = scmp.eq.s32.totalorder %s35, 1
      %p331 = por %p329, %p330
      %p332 = scmp.ne.s32.totalorder %s323, %s324
      %p333 = scmp.eq.s32.totalorder %s35, 0
      %p334 = por %p332, %p333
      %p335 = scmp.ne.s32.totalorder %s323, %s324
      %p336 = scmp.eq.s32.totalorder %s36, 1
      %p337 = por %p335, %p336
      %p339 = scmp.ne.s32.totalorder %s324, %s338
      %p340 = scmp.eq.s32.totalorder %s36, 0
      %p341 = por %p339, %p340
      %s343 = sadd.s32 %s342, 1
      %p346 = scmp.eq.s32.totalorder %s30, 1
      %p347 = scmp.ne.s32.totalorder %s342, %s344
      %p348 = scmp.eq.s32.totalorder %s30, 0
      %p349 = por %p347, %p348
      %p350 = scmp.ne.s32.totalorder %s342, %s344
      %p351 = scmp.eq.s32.totalorder %s35, 1
      %p352 = por %p350, %p351
      %p353 = scmp.ne.s32.totalorder %s344, %s345
      %p354 = scmp.eq.s32.totalorder %s35, 0
      %p355 = por %p353, %p354
      %p356 = scmp.ne.s32.totalorder %s344, %s345
      %p357 = scmp.eq.s32.totalorder %s36, 1
      %p358 = por %p356, %p357
      %p360 = scmp.ne.s32.totalorder %s345, %s359
      %p361 = scmp.eq.s32.totalorder %s36, 0
      %p362 = por %p360, %p361
      %s364 = sadd.s32 %s363, 1
      %p367 = scmp.eq.s32.totalorder %s30, 1
      %p368 = scmp.ne.s32.totalorder %s363, %s365
      %p369 = scmp.eq.s32.totalorder %s30, 0
      %p370 = por %p368, %p369
      %p371 = scmp.ne.s32.totalorder %s363, %s365
      %p372 = scmp.eq.s32.totalorder %s35, 1
      %p373 = por %p371, %p372
      %p374 = scmp.ne.s32.totalorder %s365, %s366
      %p375 = scmp.eq.s32.totalorder %s35, 0
      %p376 = por %p374, %p375
      %p377 = scmp.ne.s32.totalorder %s365, %s366
      %p378 = scmp.eq.s32.totalorder %s36, 1
      %p379 = por %p377, %p378
      %p381 = scmp.ne.s32.totalorder %s366, %s380
      %p382 = scmp.eq.s32.totalorder %s36, 0
      %p383 = por %p381, %p382
      %s385 = sadd.s32 %s384, 1
      %p388 = scmp.eq.s32.totalorder %s30, 1
      %p389 = scmp.ne.s32.totalorder %s384, %s386
      %p390 = scmp.eq.s32.totalorder %s30, 0
      %p391 = por %p389, %p390
      %p392 = scmp.ne.s32.totalorder %s384, %s386
      %p393 = scmp.eq.s32.totalorder %s35, 1
      %p394 = por %p392, %p393
      %p395 = scmp.ne.s32.totalorder %s386, %s387
      %p396 = scmp.eq.s32.totalorder %s35, 0
      %p397 = por %p395, %p396
      %p398 = scmp.ne.s32.totalorder %s386, %s387
      %p399 = scmp.eq.s32.totalorder %s36, 1
      %p400 = por %p398, %p399
      %p402 = scmp.ne.s32.totalorder %s387, %s401
      %p403 = scmp.eq.s32.totalorder %s36, 0
      %p404 = por %p402, %p403
      %s406 = sadd.s32 %s405, 1
      %p409 = scmp.eq.s32.totalorder %s30, 1
      %p410 = scmp.ne.s32.totalorder %s405, %s407
      %p411 = scmp.eq.s32.totalorder %s30, 0
      %p412 = por %p410, %p411
      %p413 = scmp.ne.s32.totalorder %s405, %s407
      %p414 = scmp.eq.s32.totalorder %s35, 1
      %p415 = por %p413, %p414
      %p416 = scmp.ne.s32.totalorder %s407, %s408
      %p417 = scmp.eq.s32.totalorder %s35, 0
      %p418 = por %p416, %p417
      %p419 = scmp.ne.s32.totalorder %s407, %s408
      %p420 = scmp.eq.s32.totalorder %s36, 1
      %p421 = por %p419, %p420
      %p423 = scmp.ne.s32.totalorder %s408, %s422
      %p424 = scmp.eq.s32.totalorder %s36, 0
      %p425 = por %p423, %p424
      %s427 = sadd.s32 %s426, 1
      %p430 = scmp.eq.s32.totalorder %s30, 1
      %p431 = scmp.ne.s32.totalorder %s426, %s428
      %p432 = scmp.eq.s32.totalorder %s30, 0
      %p433 = por %p431, %p432
      %p434 = scmp.ne.s32.totalorder %s426, %s428
      %p435 = scmp.eq.s32.totalorder %s35, 1
      %p436 = por %p434, %p435
      %p437 = scmp.ne.s32.totalorder %s428, %s429
      %p438 = scmp.eq.s32.totalorder %s35, 0
      %p439 = por %p437, %p438
      %p440 = scmp.ne.s32.totalorder %s428, %s429
      %p441 = scmp.eq.s32.totalorder %s36, 1
      %p442 = por %p440, %p441
      %p444 = scmp.ne.s32.totalorder %s429, %s443
      %p445 = scmp.eq.s32.totalorder %s36, 0
      %p446 = por %p444, %p445
      %s448 = sadd.s32 %s447, 1
      %p451 = scmp.eq.s32.totalorder %s30, 1
      %p452 = scmp.ne.s32.totalorder %s447, %s449
      %p453 = scmp.eq.s32.totalorder %s30, 0
      %p454 = por %p452, %p453
      %p455 = scmp.ne.s32.totalorder %s447, %s449
      %p456 = scmp.eq.s32.totalorder %s35, 1
      %p457 = por %p455, %p456
      %p458 = scmp.ne.s32.totalorder %s449, %s450
      %p459 = scmp.eq.s32.totalorder %s35, 0
      %p460 = por %p458, %p459
      %p461 = scmp.ne.s32.totalorder %s449, %s450
      %p462 = scmp.eq.s32.totalorder %s36, 1
      %p463 = por %p461, %p462
      %p465 = scmp.ne.s32.totalorder %s450, %s464
      %p466 = scmp.eq.s32.totalorder %s36, 0
      %p467 = por %p465, %p466
      %s468 = ssub.s32 %s37, %s49
      %s469 = ssub.s32 %s38, %s45
      %s470 = sor.u32 %s468, %s469
      %p471 = scmp.eq.s32.totalorder %s470, 0
      %s473 = sadd.s32 %s472, 1
      %s474 = scalar_select %p471, %s472, %s473
      %p477 = pneg %p471
      %p478 = scmp.eq.s32.totalorder %s30, 1
      %p479 = por %p477, %p478
      %p480 = scmp.ne.s32.totalorder %s472, %s475
      %p481 = scmp.eq.s32.totalorder %s30, 0
      %p482 = por %p480, %p481
      %p483 = scmp.ne.s32.totalorder %s472, %s475
      %p484 = scmp.eq.s32.totalorder %s35, 1
      %p485 = por %p483, %p484
      %p486 = scmp.ne.s32.totalorder %s475, %s476
      %p487 = scmp.eq.s32.totalorder %s35, 0
      %p488 = por %p486, %p487
      %p489 = scmp.ne.s32.totalorder %s475, %s476
      %p490 = scmp.eq.s32.totalorder %s36, 1
      %p491 = por %p489, %p490
      %p493 = scmp.ne.s32.totalorder %s476, %s492
      %p494 = scmp.eq.s32.totalorder %s36, 0
      %p495 = por %p493, %p494
      %p496 = scmp.le.s32.totalorder 1, %s30
      %p497 = scmp.lt.s32.totalorder %s30, 3
      %p498 = pnand %p496, %p497
      %p499 = pneg %p498
      // Predicated region
      $region9: #{tpu_custom_call.1} parent=5 // pred_check
        _
      $region10: #{tpu_custom_call.1} parent=5 // pred_check_branch
        %501 = sbr.rel (%p498) target = $region12
      $region11: #{tpu_custom_call.1} parent=5 // pred_region
        %s502 = ssub.s32 %s30, 1
        // Predicated region
        $region13: #{tpu_custom_call.1} parent=11 // pred_check
          %p503 = pneg %p145
        $region14: #{tpu_custom_call.1} parent=11 // pred_check_branch
          %505 = sbr.rel (%p503) target = $region16
        $region15: #{tpu_custom_call.1} parent=11 // pred_region
          _
        $region16: #{tpu_custom_call.1} parent=11 // pred_fallthru
          _
        // Predicated region
        $region17: #{tpu_custom_call.1} parent=11 // pred_check
          %p506 = pneg %p166
        $region18: #{tpu_custom_call.1} parent=11 // pred_check_branch
          %508 = sbr.rel (%p506) target = $region20
        $region19: #{tpu_custom_call.1} parent=11 // pred_region
          _
        $region20: #{tpu_custom_call.1} parent=11 // pred_fallthru
          _
        // Predicated region
        $region21: #{tpu_custom_call.1} parent=11 // pred_check
          %p509 = pneg %p187
        $region22: #{tpu_custom_call.1} parent=11 // pred_check_branch
          %511 = sbr.rel (%p509) target = $region24
        $region23: #{tpu_custom_call.1} parent=11 // pred_region
          _
        $region24: #{tpu_custom_call.1} parent=11 // pred_fallthru
          _
        // Predicated region
        $region25: #{tpu_custom_call.1} parent=11 // pred_check
          %p512 = pneg %p208
        $region26: #{tpu_custom_call.1} parent=11 // pred_check_branch
          %514 = sbr.rel (%p512) target = $region28
        $region27: #{tpu_custom_call.1} parent=11 // pred_region
          _
        $region28: #{tpu_custom_call.1} parent=11 // pred_fallthru
          _
        // Predicated region
        $region29: #{tpu_custom_call.1} parent=11 // pred_check
          %p515 = pneg %p229
        $region30: #{tpu_custom_call.1} parent=11 // pred_check_branch
          %517 = sbr.rel (%p515) target = $region32
        $region31: #{tpu_custom_call.1} parent=11 // pred_region
          %519 = vsyncadd [#allocation3], 0
          %s520 = sshll.u32 %s7, 4
          %s521 = int_to_ptr.hbm [resolvable:$true] %s520
          %s522 = sshll.u32 [#allocation2], 4
          %s523 = int_to_ptr.vmem [resolvable:$true] %s522
          %528 = dma.hbm_to_vmem [thread:$0]  %s521, 256, %s523, [#allocation3], 64, 64, 4
        $region32: #{tpu_custom_call.1} parent=11 // pred_fallthru
          _
        // Predicated region
        $region33: #{tpu_custom_call.1} parent=11 // pred_check
          %p529 = pneg %p250
        $region34: #{tpu_custom_call.1} parent=11 // pred_check_branch
          %531 = sbr.rel (%p529) target = $region36
        $region35: #{tpu_custom_call.1} parent=11 // pred_region
          _
        $region36: #{tpu_custom_call.1} parent=11 // pred_fallthru
          _
        // Predicated region
        $region37: #{tpu_custom_call.1} parent=11 // pred_check
          %p532 = pneg %p271
        $region38: #{tpu_custom_call.1} parent=11 // pred_check_branch
          %534 = sbr.rel (%p532) target = $region40
        $region39: #{tpu_custom_call.1} parent=11 // pred_region
          %536 = vsyncadd [#allocation6], 0
          %s537 = sshll.u32 %s9, 4
          %s538 = int_to_ptr.hbm [resolvable:$true] %s537
          %s539 = sshll.u32 [#allocation5], 4
          %s540 = int_to_ptr.vmem [resolvable:$true] %s539
          %545 = dma.hbm_to_vmem [thread:$0]  %s538, 256, %s540, [#allocation6], 64, 64, 4
        $region40: #{tpu_custom_call.1} parent=11 // pred_fallthru
          _
        // Predicated region
        $region41: #{tpu_custom_call.1} parent=11 // pred_check
          %p546 = pneg %p292
        $region42: #{tpu_custom_call.1} parent=11 // pred_check_branch
          %548 = sbr.rel (%p546) target = $region44
        $region43: #{tpu_custom_call.1} parent=11 // pred_region
          _
        $region44: #{tpu_custom_call.1} parent=11 // pred_fallthru
          _
        // Predicated region
        $region45: #{tpu_custom_call.1} parent=11 // pred_check
          %p549 = pneg %p313
        $region46: #{tpu_custom_call.1} parent=11 // pred_check_branch
          %551 = sbr.rel (%p549) target = $region48
        $region47: #{tpu_custom_call.1} parent=11 // pred_region
          _
        $region48: #{tpu_custom_call.1} parent=11 // pred_fallthru
          _
        // Predicated region
        $region49: #{tpu_custom_call.1} parent=11 // pred_check
          %p552 = pneg %p334
        $region50: #{tpu_custom_call.1} parent=11 // pred_check_branch
          %554 = sbr.rel (%p552) target = $region52
        $region51: #{tpu_custom_call.1} parent=11 // pred_region
          _
        $region52: #{tpu_custom_call.1} parent=11 // pred_fallthru
          _
        // Predicated region
        $region53: #{tpu_custom_call.1} parent=11 // pred_check
          %p555 = pneg %p355
        $region54: #{tpu_custom_call.1} parent=11 // pred_check_branch
          %557 = sbr.rel (%p555) target = $region56
        $region55: #{tpu_custom_call.1} parent=11 // pred_region
          %559 = vsyncadd [#allocation6], 0
          %s560 = sshll.u32 %s13, 4
          %s561 = int_to_ptr.hbm [resolvable:$true] %s560
          %s562 = sshll.u32 [#allocation7], 4
          %s563 = int_to_ptr.vmem [resolvable:$true] %s562
          %568 = dma.hbm_to_vmem [thread:$0]  %s561, 256, %s563, [#allocation6], 64, 64, 4
        $region56: #{tpu_custom_call.1} parent=11 // pred_fallthru
          _
        // Predicated region
        $region57: #{tpu_custom_call.1} parent=11 // pred_check
          %p569 = pneg %p376
        $region58: #{tpu_custom_call.1} parent=11 // pred_check_branch
          %571 = sbr.rel (%p569) target = $region60
        $region59: #{tpu_custom_call.1} parent=11 // pred_region
          _
        $region60: #{tpu_custom_call.1} parent=11 // pred_fallthru
          _
        // Predicated region
        $region61: #{tpu_custom_call.1} parent=11 // pred_check
          %p572 = pneg %p397
        $region62: #{tpu_custom_call.1} parent=11 // pred_check_branch
          %574 = sbr.rel (%p572) target = $region64
        $region63: #{tpu_custom_call.1} parent=11 // pred_region
          _
        $region64: #{tpu_custom_call.1} parent=11 // pred_fallthru
          _
        // Predicated region
        $region65: #{tpu_custom_call.1} parent=11 // pred_check
          %p575 = pneg %p418
        $region66: #{tpu_custom_call.1} parent=11 // pred_check_branch
          %577 = sbr.rel (%p575) target = $region68
        $region67: #{tpu_custom_call.1} parent=11 // pred_region
          _
        $region68: #{tpu_custom_call.1} parent=11 // pred_fallthru
          _
        // Predicated region
        $region69: #{tpu_custom_call.1} parent=11 // pred_check
          %p578 = pneg %p439
        $region70: #{tpu_custom_call.1} parent=11 // pred_check_branch
          %580 = sbr.rel (%p578) target = $region72
        $region71: #{tpu_custom_call.1} parent=11 // pred_region
          _
        $region72: #{tpu_custom_call.1} parent=11 // pred_fallthru
          _
        // Predicated region
        $region73: #{tpu_custom_call.1} parent=11 // pred_check
          %p581 = pneg %p460
        $region74: #{tpu_custom_call.1} parent=11 // pred_check_branch
          %583 = sbr.rel (%p581) target = $region76
        $region75: #{tpu_custom_call.1} parent=11 // pred_region
          _
        $region76: #{tpu_custom_call.1} parent=11 // pred_fallthru
          _
      $region12: #{tpu_custom_call.1} parent=5 // pred_fallthru
        _
      %p584 = scmp.lt.s32.totalorder %s30, 2
      // Predicated region
      $region77: #{tpu_custom_call.1} parent=5 // pred_check
        %p585 = pneg %p584
      $region78: #{tpu_custom_call.1} parent=5 // pred_check_branch
        %587 = sbr.rel (%p585) target = $region80
      $region79: #{tpu_custom_call.1} parent=5 // pred_region
        // Predicated region
        $region81: #{tpu_custom_call.1} parent=79 // pred_check
          %p588 = pneg %p64
        $region82: #{tpu_custom_call.1} parent=79 // pred_check_branch
          %590 = sbr.rel (%p588) target = $region84
        $region83: #{tpu_custom_call.1} parent=79 // pred_region
          %p591 = scmp.lt.s32.totalorder %s37, 1
          %s592 = scalar_select %p591, %s37, 1
          %p593 = scmp.lt.s32.totalorder %s38, 0
          %s594 = scalar_select %p593, %s38, 0
          %s595 = sadd.s32 %s594, %s592
          %s596 = smul.addr %s595, 8
          %s597 = scalar_lea.vmem %s0, %s596
        $region84: #{tpu_custom_call.1} parent=79 // pred_fallthru
          _
        // Predicated region
        $region85: #{tpu_custom_call.1} parent=79 // pred_check
          %p598 = pneg %p90
        $region86: #{tpu_custom_call.1} parent=79 // pred_check_branch
          %600 = sbr.rel (%p598) target = $region88
        $region87: #{tpu_custom_call.1} parent=79 // pred_region
          %p601 = scmp.lt.s32.totalorder %s37, 1
          %s602 = scalar_select %p601, %s37, 1
          %s603 = smul.addr %s602, 8
          %s604 = scalar_lea.vmem %s1, %s603
        $region88: #{tpu_custom_call.1} parent=79 // pred_fallthru
          _
        // Predicated region
        $region89: #{tpu_custom_call.1} parent=79 // pred_check
          %p605 = pneg %p118
        $region90: #{tpu_custom_call.1} parent=79 // pred_check_branch
          %607 = sbr.rel (%p605) target = $region92
        $region91: #{tpu_custom_call.1} parent=79 // pred_region
          %p608 = scmp.lt.s32.totalorder %s37, 1
          %s609 = scalar_select %p608, %s37, 1
          %p610 = scmp.lt.s32.totalorder %s38, 0
          %s611 = scalar_select %p610, %s38, 0
          %s612 = sadd.s32 %s611, %s609
          %s613 = smul.addr %s612, 8
          %s614 = scalar_lea.vmem %s2, %s613
        $region92: #{tpu_custom_call.1} parent=79 // pred_fallthru
          _
      $region80: #{tpu_custom_call.1} parent=5 // pred_fallthru
        _
      %p615 = scmp.le.s32.totalorder 1, %s30
      %p616 = scmp.lt.s32.totalorder %s30, 3
      %p617 = pnand %p615, %p616
      %p618 = pneg %p617
      // Predicated region
      $region93: #{tpu_custom_call.1} parent=5 // pred_check
        _
      $region94: #{tpu_custom_call.1} parent=5 // pred_check_branch
        %620 = sbr.rel (%p617) target = $region96
      $region95: #{tpu_custom_call.1} parent=5 // pred_region
        %s621 = ssub.s32 %s30, 1
        // Predicated region
        $region97: #{tpu_custom_call.1} parent=95 // pred_check
          %p622 = pneg %p229
        $region98: #{tpu_custom_call.1} parent=95 // pred_check_branch
          %624 = sbr.rel (%p622) target = $region100
        $region99: #{tpu_custom_call.1} parent=95 // pred_region
          %626 = dma.done [#allocation3], 256
        $region100: #{tpu_custom_call.1} parent=95 // pred_fallthru
          _
        // Predicated region
        $region101: #{tpu_custom_call.1} parent=95 // pred_check
          %p627 = pneg %p271
        $region102: #{tpu_custom_call.1} parent=95 // pred_check_branch
          %629 = sbr.rel (%p627) target = $region104
        $region103: #{tpu_custom_call.1} parent=95 // pred_region
          %631 = dma.done [#allocation6], 256
        $region104: #{tpu_custom_call.1} parent=95 // pred_fallthru
          _
        // Predicated region
        $region105: #{tpu_custom_call.1} parent=95 // pred_check
          %p632 = pneg %p355
        $region106: #{tpu_custom_call.1} parent=95 // pred_check_branch
          %634 = sbr.rel (%p632) target = $region108
        $region107: #{tpu_custom_call.1} parent=95 // pred_region
          %636 = dma.done [#allocation6], 256
        $region108: #{tpu_custom_call.1} parent=95 // pred_fallthru
          _
        %p637 = scmp.lt.s32.totalorder %s39, 1
        %s638 = scalar_select %p637, %s39, 1
        %p639 = scmp.lt.s32.totalorder %s40, 0
        %s640 = scalar_select %p639, %s40, 0
        %s641 = sadd.s32 %s640, %s638
        %s642 = smul.addr %s641, 8
        %s643 = scalar_lea.vmem %s0, %s642
        %p644 = pneg %p70
        %p645 = pneg %p67
        %p646 = scmp.lt.s32.totalorder %s39, 1
        %s647 = scalar_select %p646, %s39, 1
        %s648 = smul.addr %s647, 8
        %s649 = scalar_lea.vmem %s1, %s648
        %p650 = pneg %p96
        %p651 = pneg %p93
        %p652 = scmp.lt.s32.totalorder %s39, 1
        %s653 = scalar_select %p652, %s39, 1
        %p654 = scmp.lt.s32.totalorder %s40, 0
        %s655 = scalar_select %p654, %s40, 0
        %s656 = sadd.s32 %s655, %s653
        %s657 = smul.addr %s656, 8
        %s658 = scalar_lea.vmem %s2, %s657
        %p659 = pneg %p124
        %p660 = pneg %p121
        %p661 = pneg %p145
        %p662 = pneg %p142
        %p663 = pneg %p166
        %p664 = pneg %p163
        %p665 = pneg %p187
        %p666 = pneg %p184
        %p667 = pneg %p208
        %p668 = pneg %p205
        %p669 = pneg %p229
        %p670 = pneg %p226
        %p671 = pneg %p250
        %p672 = pneg %p247
        %p673 = pneg %p271
        %p674 = pneg %p268
        %p675 = pneg %p292
        %p676 = pneg %p289
        %p677 = pneg %p313
        %p678 = pneg %p310
        %p679 = pneg %p334
        %p680 = pneg %p331
        %p681 = pneg %p355
        %p682 = pneg %p352
        %p683 = pneg %p376
        %p684 = pneg %p373
        %p685 = pneg %p397
        %p686 = pneg %p394
        %p687 = pneg %p418
        %p688 = pneg %p415
        %p689 = pneg %p439
        %p690 = pneg %p436
        %p691 = pneg %p460
        %p692 = pneg %p457
        %p693 = pneg %p488
        %p694 = pneg %p485
        %s695 = sand.u32 %s475, 1
        %s696 = scalar_lea.sflag [#allocation4], %s695
        %s697 = sand.u32 %s475, 1
        %s698 = smul.addr %s697, 8
        %s699 = scalar_lea.vmem [#allocation8], %s698
        %p700 = scmp.lt.s32.totalorder %s39, 1
        %s701 = scalar_select %p700, %s39, 1
        %p702 = scmp.lt.s32.totalorder %s40, 0
        %s703 = scalar_select %p702, %s40, 0
        %s704 = sadd.s32 %s703, %s701
        %s705 = smul.addr %s704, 8
        %s706 = scalar_lea.vmem %s0, %s705
        %p707 = scmp.lt.s32.totalorder %s39, 1
        %s708 = scalar_select %p707, %s39, 1
        %s709 = smul.addr %s708, 8
        %s710 = scalar_lea.vmem %s1, %s709
        %p711 = scmp.lt.s32.totalorder %s39, 1
        %s712 = scalar_select %p711, %s39, 1
        %p713 = scmp.lt.s32.totalorder %s40, 0
        %s714 = scalar_select %p713, %s40, 0
        %s715 = sadd.s32 %s714, %s712
        %s716 = smul.addr %s715, 8
        %s717 = scalar_lea.vmem %s2, %s716
        %v719 = vld [vmem:[%s706] sm:$0xff]
        %v720 = vld [vmem:[%s710] sm:$0xff]
        %v721 = vpack.c.bf16 %v719, %v719
        %v722 = vpack.c.bf16 %v720, %v720
        %v723 = vld [vmem:[%s3] sm:$0xf]
        %v724 = vld [vmem:[%s3 + $0x4] sm:$0xf]
        %v725 = vld [vmem:[%s3 + $0x8] sm:$0xf]
        %v726 = vld [vmem:[%s3 + $0xc] sm:$0xf]
        %v727 = vld [vmem:[%s4] sm:$0x1]
        %v729 = vperm.slane %v727, 0
        %v735 = vunpack.c.l.b16 %v723
        %v736 = vunpack.c.l.b16 %v724
        %v737 = vunpack.c.l.b16 %v725
        %v738 = vunpack.c.l.b16 %v726
        %v739 = vpack.c.b16 %v736, %v735
        %v740 = vpack.c.b16 %v738, %v737
        %vm743 = vcmask 261120
        %v745 = vsel %vm743, %v721, 0
        %747 = vmatpush.bf16.msra.mxu0 0
        %748 = vmatpush.bf16.msra.mxu0 0
        %749 = vmatpush.bf16.msra.mxu0 0
        %750 = vmatpush.bf16.msra.mxu0 0
        %751 = vmatpush.bf16.msra.mxu0 0
        %752 = vmatpush.bf16.msra.mxu0 0
        %753 = vmatpush.bf16.msra.mxu0 %v740
        %754 = vmatpush.bf16.msra.mxu0 %v739
        %755 = vmatmul.bf16.gmra.mxu0 %v745
        %v756 = vpop.f32.mrf.mxu0
        %v757 = vadd.f32 %v729, %v756
        %v758 = vpop.f32.mrf.mxu0
        %759 = vdwg.mxu0
        %v760 = vld [vmem:[%s5] sm:$0xf]
        %v761 = vld [vmem:[%s5 + $0x4] sm:$0xf]
        %v762 = vld [vmem:[%s5 + $0x8] sm:$0xf]
        %v763 = vld [vmem:[%s5 + $0xc] sm:$0xf]
        %v764 = vld [vmem:[%s6] sm:$0x1]
        %v766 = vperm.slane %v764, 0
        %v772 = vunpack.c.l.b16 %v760
        %v773 = vunpack.c.l.b16 %v761
        %v774 = vunpack.c.l.b16 %v762
        %v775 = vunpack.c.l.b16 %v763
        %v776 = vpack.c.b16 %v773, %v772
        %v777 = vpack.c.b16 %v775, %v774
        %v781 = vsel %vm743, %v722, 0
        %783 = vmatpush.bf16.msra.mxu0 0
        %784 = vmatpush.bf16.msra.mxu0 0
        %785 = vmatpush.bf16.msra.mxu0 0
        %786 = vmatpush.bf16.msra.mxu0 0
        %787 = vmatpush.bf16.msra.mxu0 0
        %788 = vmatpush.bf16.msra.mxu0 0
        %789 = vmatpush.bf16.msra.mxu0 %v777
        %790 = vmatpush.bf16.msra.mxu0 %v776
        %791 = vmatmul.bf16.gmra.mxu0 %v781
        %v792 = vpop.f32.mrf.mxu0
        %v793 = vadd.f32 %v766, %v792
        %v794 = vpop.f32.mrf.mxu0
        %795 = vdwg.mxu0
        %v796 = vld [vmem:[#allocation2] sm:$0xf]
        %v797 = vld [vmem:[#allocation2 + $0x4] sm:$0xf]
        %v798 = vld [vmem:[#allocation2 + $0x8] sm:$0xf]
        %v799 = vld [vmem:[#allocation2 + $0xc] sm:$0xf]
        %v800 = vld [vmem:[%s8] sm:$0x1]
        %v802 = vperm.slane %v800, 0
        %v808 = vunpack.c.l.b16 %v796
        %v809 = vunpack.c.l.b16 %v797
        %v810 = vunpack.c.l.b16 %v798
        %v811 = vunpack.c.l.b16 %v799
        %v812 = vpack.c.b16 %v809, %v808
        %v813 = vpack.c.b16 %v811, %v810
        %816 = vmatpush.bf16.msra.mxu0 0
        %817 = vmatpush.bf16.msra.mxu0 0
        %818 = vmatpush.bf16.msra.mxu0 0
        %819 = vmatpush.bf16.msra.mxu0 0
        %820 = vmatpush.bf16.msra.mxu0 0
        %821 = vmatpush.bf16.msra.mxu0 0
        %822 = vmatpush.bf16.msra.mxu0 %v813
        %823 = vmatpush.bf16.msra.mxu0 %v812
        %824 = vmatmul.bf16.gmra.mxu0 %v781
        %v825 = vpop.f32.mrf.mxu0
        %v826 = vadd.f32 %v802, %v825
        %v827 = vpop.f32.mrf.mxu0
        %828 = vdwg.mxu0
        %v829 = vld [vmem:[%s717] sm:$0xff]
        %vm830 = vcmp.eq.f32.partialorder %v829, 0.0
        %v831 = vsel %vm830, -1e+09, 0.0
        %v832 = vpack.c.bf16 %v757, %v757
        %v833 = vpack.c.bf16 %v793, %v793
        %v834 = vpack.c.bf16 %v826, %v826
        %vm835 = vcmask 64512
        %v837 = vsel %vm835, %v832, 0
        %v840 = vsel %vm835, %v833, 0
        %842 = vmatpush.bf16.xpose.msra.mxu0 0
        %843 = vmatpush.bf16.xpose.msra.mxu0 0
        %844 = vmatpush.bf16.xpose.msra.mxu0 0
        %845 = vmatpush.bf16.xpose.msra.mxu0 0
        %846 = vmatpush.bf16.xpose.msra.mxu0 0
        %847 = vmatpush.bf16.xpose.msra.mxu0 0
        %848 = vmatpush.bf16.xpose.msra.mxu0 0
        %849 = vmatpush.bf16.xpose.msra.mxu0 %v840
        %850 = vmatmul.bf16.gmra.mxu0 %v837
        %v851 = vpop.f32.mrf.mxu0
        %v852 = vadd.f32 0.0, %v851
        %v853 = vpop.f32.mrf.mxu0
        %854 = vdwg.mxu0
        %v855 = vmul.f32 %v852, 0.35355338
        %v856 = vadd.f32 %v855, %v831
        %v857 = vsel %vm835, %v856, -inf
        %858 = vmax.xlane.f32.xlu0 %v857
        %v859 = vpop.xlane.xlu0 %858
        %v860 = vsub.f32 %v856, %v859
        %v861 = vmul.f32 %v860, 1.442695
        %v862 = vpow.pop %v861
        %v863 = vsel %vm835, %v862, 0.0
        %864 = vadd.xlane.f32.xlu0 %v863
        %v865 = vpop.xlane.xlu0 %864
        %v866 = vrcp.pop %v865
        %v867 = vmul.f32 %v862, %v866
        %v868 = vpack.c.bf16 %v867, %v867
        %v870 = vsel %vm835, %v868, 0
        %vm872 = vcmask 1043456
        %v874 = vsel %vm872, %v834, 0
        %876 = vmatpush.bf16.msra.mxu0 0
        %877 = vmatpush.bf16.msra.mxu0 0
        %878 = vmatpush.bf16.msra.mxu0 0
        %879 = vmatpush.bf16.msra.mxu0 0
        %880 = vmatpush.bf16.msra.mxu0 0
        %881 = vmatpush.bf16.msra.mxu0 0
        %882 = vmatpush.bf16.msra.mxu0 0
        %883 = vmatpush.bf16.msra.mxu0 %v874
        %884 = vmatmul.bf16.gmra.mxu0 %v870
        %v885 = vpop.f32.mrf.mxu0
        %v886 = vadd.f32 0.0, %v885
        %v887 = vpop.f32.mrf.mxu0
        %888 = vdwg.mxu0
        %v889 = vpack.c.bf16 %v886, %v886
        %v890 = vld [vmem:[#allocation5] sm:$0xf]
        %892 = vrot.lane.b32.xlu0 %v832, 120
        %v893 = vpop.permute.xlu0 %892
        %895 = vrot.lane.b32.xlu0 %v833, 120
        %v896 = vpop.permute.xlu0 %895
        %v898 = vsel %vm835, %v893, 0
        %v901 = vsel %vm835, %v896, 0
        %903 = vmatpush.bf16.xpose.msra.mxu0 0
        %904 = vmatpush.bf16.xpose.msra.mxu0 0
        %905 = vmatpush.bf16.xpose.msra.mxu0 0
        %906 = vmatpush.bf16.xpose.msra.mxu0 0
        %907 = vmatpush.bf16.xpose.msra.mxu0 0
        %908 = vmatpush.bf16.xpose.msra.mxu0 0
        %909 = vmatpush.bf16.xpose.msra.mxu0 0
        %910 = vmatpush.bf16.xpose.msra.mxu0 %v901
        %911 = vmatmul.bf16.gmra.mxu0 %v898
        %v912 = vpop.f32.mrf.mxu0
        %v913 = vadd.f32 0.0, %v912
        %v914 = vpop.f32.mrf.mxu0
        %915 = vdwg.mxu0
        %v916 = vmul.f32 %v913, 0.35355338
        %v917 = vadd.f32 %v916, %v831
        %v918 = vsel %vm835, %v917, -inf
        %919 = vmax.xlane.f32.xlu0 %v918
        %v920 = vpop.xlane.xlu0 %919
        %v921 = vsub.f32 %v917, %v920
        %v922 = vmul.f32 %v921, 1.442695
        %v923 = vpow.pop %v922
        %v924 = vsel %vm835, %v923, 0.0
        %925 = vadd.xlane.f32.xlu0 %v924
        %v926 = vpop.xlane.xlu0 %925
        %v927 = vrcp.pop %v926
        %v928 = vmul.f32 %v923, %v927
        %v929 = vpack.c.bf16 %v928, %v928
        %931 = vrot.lane.b32.xlu0 %v834, 120
        %v932 = vpop.permute.xlu0 %931
        %v934 = vsel %vm835, %v929, 0
        %v937 = vsel %vm872, %v932, 0
        %939 = vmatpush.bf16.msra.mxu0 0
        %940 = vmatpush.bf16.msra.mxu0 0
        %941 = vmatpush.bf16.msra.mxu0 0
        %942 = vmatpush.bf16.msra.mxu0 0
        %943 = vmatpush.bf16.msra.mxu0 0
        %944 = vmatpush.bf16.msra.mxu0 0
        %945 = vmatpush.bf16.msra.mxu0 0
        %946 = vmatpush.bf16.msra.mxu0 %v937
        %947 = vmatmul.bf16.gmra.mxu0 %v934
        %v948 = vpop.f32.mrf.mxu0
        %v949 = vadd.f32 0.0, %v948
        %v950 = vpop.f32.mrf.mxu0
        %951 = vdwg.mxu0
        %v952 = vpack.c.bf16 %v949, %v949
        %s953 = scalar_lea.vmem [#allocation5], 4
        %v954 = vld [vmem:[%s953] sm:$0xf]
        %v956 = vsel %vm835, %v952, 0
        %v959 = vsel %vm872, %v954, 0
        %961 = vmatpush.bf16.msra.mxu0 0
        %962 = vmatpush.bf16.msra.mxu0 0
        %963 = vmatpush.bf16.msra.mxu0 0
        %964 = vmatpush.bf16.msra.mxu0 0
        %965 = vmatpush.bf16.msra.mxu0 0
        %966 = vmatpush.bf16.msra.mxu0 0
        %967 = vmatpush.bf16.msra.mxu0 0
        %968 = vmatpush.bf16.msra.mxu0 %v959
        %969 = vmatmul.bf16.gmra.mxu0 %v956
        %v970 = vpop.f32.mrf.mxu0
        %v971 = vadd.f32 0.0, %v970
        %v972 = vpop.f32.mrf.mxu0
        %973 = vdwg.mxu0
        %v975 = vsel %vm835, %v889, 0
        %v978 = vsel %vm872, %v890, 0
        %980 = vmatpush.bf16.msra.mxu0 0
        %981 = vmatpush.bf16.msra.mxu0 0
        %982 = vmatpush.bf16.msra.mxu0 0
        %983 = vmatpush.bf16.msra.mxu0 0
        %984 = vmatpush.bf16.msra.mxu0 0
        %985 = vmatpush.bf16.msra.mxu0 0
        %986 = vmatpush.bf16.msra.mxu0 0
        %987 = vmatpush.bf16.msra.mxu0 %v978
        %988 = vmatmul.bf16.gmra.mxu0 %v975
        %v989 = vpop.f32.mrf.mxu0
        %v990 = vadd.f32 %v971, %v989
        %v991 = vpop.f32.mrf.mxu0
        %992 = vdwg.mxu0
        %993 = vrot.lane.b32.xlu0 %v832, 112
        %v994 = vpop.permute.xlu0 %993
        %995 = vrot.lane.b32.xlu0 %v833, 112
        %v996 = vpop.permute.xlu0 %995
        %v998 = vsel %vm835, %v994, 0
        %v1001 = vsel %vm835, %v996, 0
        %1003 = vmatpush.bf16.xpose.msra.mxu0 0
        %1004 = vmatpush.bf16.xpose.msra.mxu0 0
        %1005 = vmatpush.bf16.xpose.msra.mxu0 0
        %1006 = vmatpush.bf16.xpose.msra.mxu0 0
        %1007 = vmatpush.bf16.xpose.msra.mxu0 0
        %1008 = vmatpush.bf16.xpose.msra.mxu0 0
        %1009 = vmatpush.bf16.xpose.msra.mxu0 0
        %1010 = vmatpush.bf16.xpose.msra.mxu0 %v1001
        %1011 = vmatmul.bf16.gmra.mxu0 %v998
        %v1012 = vpop.f32.mrf.mxu0
        %v1013 = vadd.f32 0.0, %v1012
        %v1014 = vpop.f32.mrf.mxu0
        %1015 = vdwg.mxu0
        %v1016 = vmul.f32 %v1013, 0.35355338
        %v1017 = vadd.f32 %v1016, %v831
        %v1018 = vsel %vm835, %v1017, -inf
        %1019 = vmax.xlane.f32.xlu0 %v1018
        %v1020 = vpop.xlane.xlu0 %1019
        %v1021 = vsub.f32 %v1017, %v1020
        %v1022 = vmul.f32 %v1021, 1.442695
        %v1023 = vpow.pop %v1022
        %v1024 = vsel %vm835, %v1023, 0.0
        %1025 = vadd.xlane.f32.xlu0 %v1024
        %v1026 = vpop.xlane.xlu0 %1025
        %v1027 = vrcp.pop %v1026
        %v1028 = vmul.f32 %v1023, %v1027
        %v1029 = vpack.c.bf16 %v1028, %v1028
        %1030 = vrot.lane.b32.xlu0 %v834, 112
        %v1031 = vpop.permute.xlu0 %1030
        %v1033 = vsel %vm835, %v1029, 0
        %v1036 = vsel %vm872, %v1031, 0
        %1038 = vmatpush.bf16.msra.mxu0 0
        %1039 = vmatpush.bf16.msra.mxu0 0
        %1040 = vmatpush.bf16.msra.mxu0 0
        %1041 = vmatpush.bf16.msra.mxu0 0
        %1042 = vmatpush.bf16.msra.mxu0 0
        %1043 = vmatpush.bf16.msra.mxu0 0
        %1044 = vmatpush.bf16.msra.mxu0 0
        %1045 = vmatpush.bf16.msra.mxu0 %v1036
        %1046 = vmatmul.bf16.gmra.mxu0 %v1033
        %v1047 = vpop.f32.mrf.mxu0
        %v1048 = vadd.f32 0.0, %v1047
        %v1049 = vpop.f32.mrf.mxu0
        %1050 = vdwg.mxu0
        %v1051 = vpack.c.bf16 %v1048, %v1048
        %s1052 = scalar_lea.vmem [#allocation5], 8
        %v1053 = vld [vmem:[%s1052] sm:$0xf]
        %v1055 = vsel %vm835, %v1051, 0
        %v1058 = vsel %vm872, %v1053, 0
        %1060 = vmatpush.bf16.msra.mxu0 0
        %1061 = vmatpush.bf16.msra.mxu0 0
        %1062 = vmatpush.bf16.msra.mxu0 0
        %1063 = vmatpush.bf16.msra.mxu0 0
        %1064 = vmatpush.bf16.msra.mxu0 0
        %1065 = vmatpush.bf16.msra.mxu0 0
        %1066 = vmatpush.bf16.msra.mxu0 0
        %1067 = vmatpush.bf16.msra.mxu0 %v1058
        %1068 = vmatmul.bf16.gmra.mxu0 %v1055
        %v1069 = vpop.f32.mrf.mxu0
        %v1070 = vadd.f32 0.0, %v1069
        %v1071 = vpop.f32.mrf.mxu0
        %1072 = vdwg.mxu0
        %v1073 = vadd.f32 %v990, %v1070
        %1074 = vrot.lane.b32.xlu0 %v832, 104
        %v1075 = vpop.permute.xlu0 %1074
        %1076 = vrot.lane.b32.xlu0 %v833, 104
        %v1077 = vpop.permute.xlu0 %1076
        %v1079 = vsel %vm835, %v1075, 0
        %v1082 = vsel %vm835, %v1077, 0
        %1084 = vmatpush.bf16.xpose.msra.mxu0 0
        %1085 = vmatpush.bf16.xpose.msra.mxu0 0
        %1086 = vmatpush.bf16.xpose.msra.mxu0 0
        %1087 = vmatpush.bf16.xpose.msra.mxu0 0
        %1088 = vmatpush.bf16.xpose.msra.mxu0 0
        %1089 = vmatpush.bf16.xpose.msra.mxu0 0
        %1090 = vmatpush.bf16.xpose.msra.mxu0 0
        %1091 = vmatpush.bf16.xpose.msra.mxu0 %v1082
        %1092 = vmatmul.bf16.gmra.mxu0 %v1079
        %v1093 = vpop.f32.mrf.mxu0
        %v1094 = vadd.f32 0.0, %v1093
        %v1095 = vpop.f32.mrf.mxu0
        %1096 = vdwg.mxu0
        %v1097 = vmul.f32 %v1094, 0.35355338
        %v1098 = vadd.f32 %v1097, %v831
        %v1099 = vsel %vm835, %v1098, -inf
        %1100 = vmax.xlane.f32.xlu0 %v1099
        %v1101 = vpop.xlane.xlu0 %1100
        %v1102 = vsub.f32 %v1098, %v1101
        %v1103 = vmul.f32 %v1102, 1.442695
        %v1104 = vpow.pop %v1103
        %v1105 = vsel %vm835, %v1104, 0.0
        %1106 = vadd.xlane.f32.xlu0 %v1105
        %v1107 = vpop.xlane.xlu0 %1106
        %v1108 = vrcp.pop %v1107
        %v1109 = vmul.f32 %v1104, %v1108
        %v1110 = vpack.c.bf16 %v1109, %v1109
        %1111 = vrot.lane.b32.xlu0 %v834, 104
        %v1112 = vpop.permute.xlu0 %1111
        %v1114 = vsel %vm835, %v1110, 0
        %v1117 = vsel %vm872, %v1112, 0
        %1119 = vmatpush.bf16.msra.mxu0 0
        %1120 = vmatpush.bf16.msra.mxu0 0
        %1121 = vmatpush.bf16.msra.mxu0 0
        %1122 = vmatpush.bf16.msra.mxu0 0
        %1123 = vmatpush.bf16.msra.mxu0 0
        %1124 = vmatpush.bf16.msra.mxu0 0
        %1125 = vmatpush.bf16.msra.mxu0 0
        %1126 = vmatpush.bf16.msra.mxu0 %v1117
        %1127 = vmatmul.bf16.gmra.mxu0 %v1114
        %v1128 = vpop.f32.mrf.mxu0
        %v1129 = vadd.f32 0.0, %v1128
        %v1130 = vpop.f32.mrf.mxu0
        %1131 = vdwg.mxu0
        %v1132 = vpack.c.bf16 %v1129, %v1129
        %s1133 = scalar_lea.vmem [#allocation5], 12
        %v1134 = vld [vmem:[%s1133] sm:$0xf]
        %v1136 = vsel %vm835, %v1132, 0
        %v1139 = vsel %vm872, %v1134, 0
        %1141 = vmatpush.bf16.msra.mxu0 0
        %1142 = vmatpush.bf16.msra.mxu0 0
        %1143 = vmatpush.bf16.msra.mxu0 0
        %1144 = vmatpush.bf16.msra.mxu0 0
        %1145 = vmatpush.bf16.msra.mxu0 0
        %1146 = vmatpush.bf16.msra.mxu0 0
        %1147 = vmatpush.bf16.msra.mxu0 0
        %1148 = vmatpush.bf16.msra.mxu0 %v1139
        %1149 = vmatmul.bf16.gmra.mxu0 %v1136
        %v1150 = vpop.f32.mrf.mxu0
        %v1151 = vadd.f32 0.0, %v1150
        %v1152 = vpop.f32.mrf.mxu0
        %1153 = vdwg.mxu0
        %v1154 = vadd.f32 %v1073, %v1151
        %v1155 = vld [vmem:[%s10] sm:$0x1]
        %v1157 = vperm.slane %v1155, 0
        %v1159 = vadd.f32 %v1154, %v1157
        %v1160 = vadd.f32 %v719, %v1159
        %v1161 = vld [vmem:[%s11] sm:$0x1]
        %v1162 = vld [vmem:[%s12] sm:$0x1]
        %v1163 = vsel %vm743, %v1160, 0.0
        %1164 = vadd.xlane.f32.xlu0 %v1163
        %v1165 = vpop.xlane.xlu0 %1164
        %v1166 = vrcp.pop 32.0
        %v1167 = vmul.f32 32.0, %v1166
        %v1168 = vsub.f32 1.0, %v1167
        %v1169 = vmul.f32 %v1166, %v1168
        %v1170 = vadd.f32 %v1166, %v1169
        %vm1171 = vweird.f32 %v1166
        %v1172 = vsel %vm1171, %v1166, %v1170
        %v1173 = vmul.f32 %v1165, %v1172
        %v1174 = vsub.f32 %v1160, %v1173
        %v1175 = vmul.f32 %v1174, %v1174
        %v1176 = vsel %vm743, %v1175, 0.0
        %1177 = vadd.xlane.f32.xlu0 %v1176
        %v1178 = vpop.xlane.xlu0 %1177
        %v1179 = vmul.f32 %v1178, 0.032258064
        %v1180 = vrsqrt.pop %v1179
        %v1181 = vmul.f32 %v1180, %v1179
        %v1182 = vmul.f32 %v1181, %v1180
        %v1183 = vmul.f32 0.5, %v1182
        %v1184 = vsub.f32 1.5, %v1183
        %v1185 = vmul.f32 %v1180, %v1184
        %v1186 = vmul.f32 %v1179, %v1185
        %vm1187 = vcmp.eq.f32.partialorder %v1179, inf
        %v1188 = vsel %vm1187, %v1179, %v1186
        %vm1189 = vcmp.eq.f32.partialorder %v1179, 0.0
        %v1190 = vand.u32 %v1179, 2147483648
        %v1191 = vsel %vm1189, %v1190, %v1188
        %v1192 = vadd.f32 %v1191, 1e-06
        %v1193 = vrcp.pop %v1192
        %v1195 = vperm.slane %v1161, 0
        %v1197 = vmul.f32 %v1195, %v1174
        %v1198 = vmul.f32 %v1197, %v1193
        %v1200 = vperm.slane %v1162, 0
        %v1202 = vadd.f32 %v1198, %v1200
        %v1203 = vpack.c.bf16 %v1202, %v1202
        %v1204 = vld [vmem:[#allocation7] sm:$0xf]
        %v1205 = vld [vmem:[#allocation7 + $0x4] sm:$0xf]
        %v1206 = vld [vmem:[#allocation7 + $0x8] sm:$0xf]
        %v1207 = vld [vmem:[#allocation7 + $0xc] sm:$0xf]
        %v1208 = vld [vmem:[%s14] sm:$0x1]
        %v1210 = vperm.slane %v1208, 0
        %v1216 = vunpack.c.l.b16 %v1204
        %v1217 = vunpack.c.l.b16 %v1205
        %v1218 = vunpack.c.l.b16 %v1206
        %v1219 = vunpack.c.l.b16 %v1207
        %v1220 = vpack.c.b16 %v1217, %v1216
        %v1221 = vpack.c.b16 %v1219, %v1218
        %v1225 = vsel %vm743, %v1203, 0
        %1227 = vmatpush.bf16.msra.mxu0 0
        %1228 = vmatpush.bf16.msra.mxu0 0
        %1229 = vmatpush.bf16.msra.mxu0 0
        %1230 = vmatpush.bf16.msra.mxu0 0
        %1231 = vmatpush.bf16.msra.mxu0 0
        %1232 = vmatpush.bf16.msra.mxu0 0
        %1233 = vmatpush.bf16.msra.mxu0 %v1221
        %1234 = vmatpush.bf16.msra.mxu0 %v1220
        %1235 = vmatmul.bf16.gmra.mxu0 %v1225
        %v1236 = vpop.f32.mrf.mxu0
        %v1237 = vadd.f32 %v1210, %v1236
        %v1238 = vpop.f32.mrf.mxu0
        %1239 = vdwg.mxu0
        %v1240 = vmax.f32 %v1237, 0.0
        %v1241 = vpack.c.bf16 %v1240, %v1240
        %v1242 = vld [vmem:[%s15] sm:$0xf]
        %v1243 = vld [vmem:[%s15 + $0x4] sm:$0xf]
        %v1244 = vld [vmem:[%s15 + $0x8] sm:$0xf]
        %v1245 = vld [vmem:[%s15 + $0xc] sm:$0xf]
        %v1246 = vld [vmem:[%s15 + $0x10] sm:$0xf]
        %v1247 = vld [vmem:[%s15 + $0x14] sm:$0xf]
        %v1248 = vld [vmem:[%s15 + $0x18] sm:$0xf]
        %v1249 = vld [vmem:[%s15 + $0x1c] sm:$0xf]
        %v1250 = vld [vmem:[%s15 + $0x20] sm:$0xf]
        %v1251 = vld [vmem:[%s15 + $0x24] sm:$0xf]
        %v1252 = vld [vmem:[%s15 + $0x28] sm:$0xf]
        %v1253 = vld [vmem:[%s15 + $0x2c] sm:$0xf]
        %v1254 = vld [vmem:[%s15 + $0x30] sm:$0xf]
        %v1255 = vld [vmem:[%s15 + $0x34] sm:$0xf]
        %v1256 = vld [vmem:[%s15 + $0x38] sm:$0xf]
        %v1257 = vld [vmem:[%s15 + $0x3c] sm:$0xf]
        %v1258 = vld [vmem:[%s16] sm:$0x1]
        %v1260 = vperm.slane %v1258, 0
        %v1278 = vunpack.c.l.b16 %v1242
        %v1279 = vunpack.c.l.b16 %v1243
        %v1280 = vunpack.c.l.b16 %v1244
        %v1281 = vunpack.c.l.b16 %v1245
        %v1282 = vunpack.c.l.b16 %v1246
        %v1283 = vunpack.c.l.b16 %v1247
        %v1284 = vunpack.c.l.b16 %v1248
        %v1285 = vunpack.c.l.b16 %v1249
        %v1286 = vunpack.c.l.b16 %v1250
        %v1287 = vunpack.c.l.b16 %v1251
        %v1288 = vunpack.c.l.b16 %v1252
        %v1289 = vunpack.c.l.b16 %v1253
        %v1290 = vunpack.c.l.b16 %v1254
        %v1291 = vunpack.c.l.b16 %v1255
        %v1292 = vunpack.c.l.b16 %v1256
        %v1293 = vunpack.c.l.b16 %v1257
        %v1294 = vpack.c.b16 %v1279, %v1278
        %v1295 = vpack.c.b16 %v1281, %v1280
        %v1296 = vpack.c.b16 %v1283, %v1282
        %v1297 = vpack.c.b16 %v1285, %v1284
        %v1298 = vpack.c.b16 %v1287, %v1286
        %v1299 = vpack.c.b16 %v1289, %v1288
        %v1300 = vpack.c.b16 %v1291, %v1290
        %v1301 = vpack.c.b16 %v1293, %v1292
        %1310 = vmatpush.bf16.msra.mxu0 %v1301
        %1311 = vmatpush.bf16.msra.mxu0 %v1300
        %1312 = vmatpush.bf16.msra.mxu0 %v1299
        %1313 = vmatpush.bf16.msra.mxu0 %v1298
        %1314 = vmatpush.bf16.msra.mxu0 %v1297
        %1315 = vmatpush.bf16.msra.mxu0 %v1296
        %1316 = vmatpush.bf16.msra.mxu0 %v1295
        %1317 = vmatpush.bf16.msra.mxu0 %v1294
        %1318 = vmatmul.bf16.gmra.mxu0 %v1241
        %v1319 = vpop.f32.mrf.mxu0
        %v1320 = vadd.f32 %v1260, %v1319
        %v1321 = vpop.f32.mrf.mxu0
        %1322 = vdwg.mxu0
        %v1323 = vadd.f32 %v1202, %v1320
        %v1324 = vld [vmem:[%s17] sm:$0x1]
        %v1325 = vld [vmem:[%s18] sm:$0x1]
        %v1326 = vsel %vm743, %v1323, 0.0
        %1327 = vadd.xlane.f32.xlu0 %v1326
        %v1328 = vpop.xlane.xlu0 %1327
        %v1329 = vmul.f32 %v1328, %v1172
        %v1330 = vsub.f32 %v1323, %v1329
        %v1331 = vmul.f32 %v1330, %v1330
        %v1332 = vsel %vm743, %v1331, 0.0
        %1333 = vadd.xlane.f32.xlu0 %v1332
        %v1334 = vpop.xlane.xlu0 %1333
        %v1335 = vmul.f32 %v1334, 0.032258064
        %v1336 = vrsqrt.pop %v1335
        %v1337 = vmul.f32 %v1336, %v1335
        %v1338 = vmul.f32 %v1337, %v1336
        %v1339 = vmul.f32 0.5, %v1338
        %v1340 = vsub.f32 1.5, %v1339
        %v1341 = vmul.f32 %v1336, %v1340
        %v1342 = vmul.f32 %v1335, %v1341
        %vm1343 = vcmp.eq.f32.partialorder %v1335, inf
        %v1344 = vsel %vm1343, %v1335, %v1342
        %vm1345 = vcmp.eq.f32.partialorder %v1335, 0.0
        %v1346 = vand.u32 %v1335, 2147483648
        %v1347 = vsel %vm1345, %v1346, %v1344
        %v1348 = vadd.f32 %v1347, 1e-06
        %v1349 = vrcp.pop %v1348
        %v1351 = vperm.slane %v1324, 0
        %v1353 = vmul.f32 %v1351, %v1330
        %v1354 = vmul.f32 %v1353, %v1349
        %v1356 = vperm.slane %v1325, 0
        %v1358 = vadd.f32 %v1354, %v1356
        %1359 = vst.msk [vmem:[%s699] sm:$0xff] %vm743, %v1358
        %s1360 = sand.u32 %s475, 1
        %s1361 = scalar_lea.sflag [#allocation4], %s1360
        %s1362 = sand.u32 %s475, 1
        %s1363 = smul.addr %s1362, 8
        %s1364 = scalar_lea.vmem [#allocation8], %s1363
        // Predicated region
        $region109: #{tpu_custom_call.1} parent=95 // pred_check
          %p1365 = pneg %p485
        $region110: #{tpu_custom_call.1} parent=95 // pred_check_branch
          %1367 = sbr.rel (%p1365) target = $region112
        $region111: #{tpu_custom_call.1} parent=95 // pred_region
          %1369 = vsyncadd %s1361, 0
          %s1370 = sadd.s32 %s40, %s39
          %s1371 = smul.addr %s1370, 8
          %s1372 = scalar_lea.hbm %s19, %s1371
          %s1374 = sshll.u32 %s1364, 4
          %s1375 = int_to_ptr.vmem [resolvable:$true] %s1374
          %s1376 = sshll.u32 %s1372, 4
          %s1377 = int_to_ptr.hbm [resolvable:$true] %s1376
          %1379 = dma.vmem_to_hbm [thread:$0]  %s1375, 128, %s1377, %s1361
        $region112: #{tpu_custom_call.1} parent=95 // pred_fallthru
          _
      $region96: #{tpu_custom_call.1} parent=5 // pred_fallthru
        _
      %p1380 = scmp.le.s32.totalorder 2, %s30
      // Predicated region
      $region113: #{tpu_custom_call.1} parent=5 // pred_check
        %p1381 = pneg %p1380
      $region114: #{tpu_custom_call.1} parent=5 // pred_check_branch
        %1383 = sbr.rel (%p1381) target = $region116
      $region115: #{tpu_custom_call.1} parent=5 // pred_region
        %s1384 = ssub.s32 %s30, 2
        // Predicated region
        $region117: #{tpu_custom_call.1} parent=115 // pred_check
          %p1385 = pneg %p491
        $region118: #{tpu_custom_call.1} parent=115 // pred_check_branch
          %1387 = sbr.rel (%p1385) target = $region120
        $region119: #{tpu_custom_call.1} parent=115 // pred_region
          %s1388 = sand.u32 %s476, 1
          %s1389 = scalar_lea.sflag [#allocation4], %s1388
          %s1390 = sand.u32 %s476, 1
          %s1391 = smul.addr %s1390, 8
          %s1392 = scalar_lea.vmem [#allocation8], %s1391
          %1394 = dma.done %s1389, 128
        $region120: #{tpu_custom_call.1} parent=115 // pred_fallthru
          _
      $region116: #{tpu_custom_call.1} parent=5 // pred_fallthru
        _
    $region6: #{tpu_custom_call.1} parent=1 // loop_footer
      %s34 = sadd.s32 1, %s30
    $region7: #{tpu_custom_call.1} parent=1 // loop_footer_branch
      %29 = sbr.rel target = $region3
    $region8: #{tpu_custom_call.1} parent=1 // loop_exit
      _
    %1395 = vsyncpa [#allocation3], 1
    %s1396 = scalar_lea.sflag [#allocation3], 1
    %1397 = vsyncpa %s1396, 1
    %1398 = vsyncpa [#allocation6], 1
    %1399 = vsyncpa [#allocation4], 1
    %s1400 = scalar_lea.sflag [#allocation4], 1
    %1401 = vsyncpa %s1400, 1

</llo_original>
